<compile_context>
chip_gen: v7x
topology: tpu7x:2x2x1
jax: 0.10.0
libtpu: 0.0.40
codegen_flags: <defaults>
</compile_context>

<pallas_src>
import functools

import jax
import jax.numpy as jnp
from jax.experimental import pallas as pl
from jax.experimental.pallas import tpu as pltpu


def _round_up(x, m):
    return (x + m - 1) // m * m


def _pad_gates(w, h, hp, *, pad_rows):
    """w: (R, 4*h), gate-major columns [i|f|g|o] -> (R or hp, 4*hp), each gate
    zero-padded from h to hp columns (and rows h->hp if pad_rows)."""
    r = w.shape[0]
    w3 = w.reshape(r, 4, h)
    w3 = jnp.pad(w3, ((0, (hp - h) if pad_rows else 0), (0, 0), (0, hp - h)))
    return w3.reshape(-1, 4 * hp)


def _block_vmem_bytes(tt, tb, hp):
    """Double-buffered pipeline footprint of all in/out blocks + scratch."""
    xproj_blk = tt * tb * 4 * hp * 2      # bf16 input block
    ot_blk = tt * tb * hp * 2             # bf16 output block
    whh = hp * 4 * hp * 2                 # bf16 resident weights
    ct_blk = tb * hp * 4                  # f32 resident output
    scratch = tb * hp * (2 + 4)           # bf16 h carry + f32 c carry
    return 2 * (xproj_blk + ot_blk + whh + ct_blk) + scratch


def _lstm_recurrence_kernel(xproj_ref, whh_ref, ot_ref, ct_ref, h_sc, c_sc,
                            *, hp, tt, t_actual, t_padded, unroll):
    """One grid step == TT LSTM time steps for one batch tile.

    xproj_ref : (TT, TB, 4*Hp) bf16  precomputed x@W_ih^T + b (gate-padded)
    whh_ref   : (Hp, 4*Hp)     bf16  W_hh^T (gate-padded, resident)
    ot_ref    : (TT, TB, Hp)   bf16  per-step hidden outputs
    ct_ref    : (1, TB, Hp)    f32   final cell state (written on last block)
    h_sc      : (TB, Hp)       bf16  recurrent hidden carry (VMEM scratch)
    c_sc      : (TB, Hp)       f32   recurrent cell carry   (VMEM scratch)
    """
    t_blk = pl.program_id(1)
    n_tblk = pl.num_programs(1)

    @pl.when(t_blk == 0)
    def _():
        h_sc[...] = jnp.zeros_like(h_sc)
        c_sc[...] = jnp.zeros_like(c_sc)

    whh = whh_ref[...]                      # bf16, loaded once per grid step

    def make_step(masked):
        def step(i, carry):
            h_prev, c_prev = carry          # bf16, f32
            # gate pre-activations: one small MXU matmul per step (bf16 in,
            # f32 accumulate); bf16 x_proj widened to f32 for the add.
            gates = xproj_ref[i].astype(jnp.float32) + jnp.dot(
                h_prev, whh, preferred_element_type=jnp.float32)
            # PyTorch LSTM gate order: i, f, g, o (each slice 128-lane aligned)
            i_g = jax.nn.sigmoid(gates[:, 0 * hp:1 * hp])
            f_g = jax.nn.sigmoid(gates[:, 1 * hp:2 * hp])
            g_g = jnp.tanh(gates[:, 2 * hp:3 * hp])
            o_g = jax.nn.sigmoid(gates[:, 3 * hp:4 * hp])
            c_new = f_g * c_prev + i_g * g_g
            h_new = (o_g * jnp.tanh(c_new)).astype(jnp.bfloat16)
            if masked:
                # only the final (padded) time block runs this path
                valid = (t_blk * tt + i) < t_actual
                h_new = jnp.where(valid, h_new, h_prev)
                c_new = jnp.where(valid, c_new, c_prev)
            ot_ref[i] = h_new
            return h_new, c_new
        return step

    def run(masked):
        h_f, c_f = jax.lax.fori_loop(0, tt, make_step(masked),
                                     (h_sc[...], c_sc[...]), unroll=unroll)
        h_sc[...] = h_f
        c_sc[...] = c_f

    if t_padded == t_actual:
        # TT divides T: no padded steps, no per-step masking anywhere.
        run(False)
    else:
        @pl.when(t_blk < n_tblk - 1)
        def _():
            run(False)

        @pl.when(t_blk == n_tblk - 1)
        def _():
            run(True)

    @pl.when(t_blk == n_tblk - 1)
    def _():
        ct_ref[0] = c_sc[...]


def lstm_recurrence_pallas(x_proj_bf16, w_hh_bf16, *, hp, tb, tt, t_actual):
    """x_proj_bf16: (Tp, Bp, 4*Hp) bf16; w_hh_bf16: (Hp, 4*Hp) bf16.
    Returns ot (Tp, Bp, Hp) bf16 and ct (1, Bp, Hp) f32."""
    Tp, Bp, G = x_proj_bf16.shape
    assert G == 4 * hp and Bp % tb == 0 and Tp % tt == 0
    n_b = Bp // tb
    n_t = Tp // tt

    # partial unroll: keep LLO visibility without blowing the 64-vreg file
    unroll = tt if tt <= 8 else 8

    kernel = functools.partial(_lstm_recurrence_kernel, hp=hp, tt=tt,
                               t_actual=t_actual, t_padded=Tp, unroll=unroll)

    # VMEM budget derived from actual block footprint; capped so it is safe on
    # v7x (64 MiB physical) as well as v5e/v6e (128 MiB).
    budget = _block_vmem_bytes(tt, tb, hp)
    vmem_limit = int(min(48 * 1024 * 1024, max(32 * 1024 * 1024, 2 * budget)))

    grid_spec = pltpu.PrefetchScalarGridSpec(
        num_scalar_prefetch=0,
        grid=(n_b, n_t),
        in_specs=[
            pl.BlockSpec((tt, tb, 4 * hp), lambda b, t: (t, b, 0)),  # x_proj
            pl.BlockSpec((hp, 4 * hp), lambda b, t: (0, 0)),         # W_hh^T
        ],
        out_specs=[
            pl.BlockSpec((tt, tb, hp), lambda b, t: (t, b, 0)),      # ot
            pl.BlockSpec((1, tb, hp), lambda b, t: (0, b, 0)),       # ct
        ],
        scratch_shapes=[
            pltpu.VMEM((tb, hp), jnp.bfloat16),   # h carry (bf16 -> no per-step cast)
            pltpu.VMEM((tb, hp), jnp.float32),    # c carry (f32 accumulation)
        ],
    )

    ot, ct = pl.pallas_call(
        kernel,
        grid_spec=grid_spec,
        out_shape=(
            jax.ShapeDtypeStruct((Tp, Bp, hp), jnp.bfloat16),
            jax.ShapeDtypeStruct((1, Bp, hp), jnp.float32),
        ),
        compiler_params=pltpu.CompilerParams(
            # batch tiles are independent -> megacore-shardable on v7x;
            # the time recurrence must stay sequential ("arbitrary").
            dimension_semantics=("parallel", "arbitrary"),
            vmem_limit_bytes=vmem_limit,
        ),
    )(x_proj_bf16, w_hh_bf16)
    return ot, ct


class Seq2SeqAttentionEncoderPallas:
    """JAX/Pallas port of torchlake Seq2SeqAttentionEncoder
    (num_layers=1, unidirectional, batch_first)."""

    def __init__(self, vocab_size, embed_dim, hidden_dim, key):
        k_emb, k_wih, k_whh, k_bih, k_bhh = jax.random.split(key, 5)
        scale = 1.0 / jnp.sqrt(hidden_dim)
        # Embedding table; row 0 zeroed to mimic padding_idx=0 of NlpContext.
        emb = jax.random.normal(k_emb, (vocab_size, embed_dim), jnp.float32)
        self.embedding = emb.at[0].set(0.0)
        # PyTorch LSTM params: weight_ih (4H, E), weight_hh (4H, H), biases (4H,)
        self.w_ih = jax.random.uniform(k_wih, (4 * hidden_dim, embed_dim),
                                       jnp.float32, -scale, scale)
        self.w_hh = jax.random.uniform(k_whh, (4 * hidden_dim, hidden_dim),
                                       jnp.float32, -scale, scale)
        self.b_ih = jax.random.uniform(k_bih, (4 * hidden_dim,), jnp.float32, -scale, scale)
        self.b_hh = jax.random.uniform(k_bhh, (4 * hidden_dim,), jnp.float32, -scale, scale)
        self.hidden_dim = hidden_dim

    def __call__(self, x_ids):
        # x_ids: (B, T) int32 token ids
        B, T = x_ids.shape
        E = self.embedding.shape[1]
        H = self.hidden_dim

        # --- shape / tiling decisions ---------------------------------------
        Hp = _round_up(H, 128)            # lane-dense gate width (see NOTE above)
        Bp = _round_up(B, 8)              # sublane-dense batch
        if Bp >= 16:
            # >= 2 batch tiles so the "parallel" axis can use both v7x
            # TensorCores; cap the tile at 128 sublanes.  (A v6e-only TB=256
            # for very large batches would fill its 256-wide MXU rows; kept at
            # 128 to stay generation-agnostic.)
            TB = max(8, min(128, _round_up(Bp // 2, 8)))
            Bp = _round_up(Bp, TB)
        else:
            TB = Bp
        # Time block: up to 32 steps per grid step (amortizes ~0.35us/step grid
        # overhead), shrunk if the double-buffered footprint would crowd v7x's
        # 64 MiB VMEM.
        TT = T if T <= 32 else 32
        while TT > 8 and _block_vmem_bytes(TT, TB, Hp) > 20 * 1024 * 1024:
            TT = (TT + 1) // 2
        Tp = _round_up(T, TT)

        # --- XLA glue: embedding gather + hoisted input projection ----------
        emb = jnp.take(self.embedding, x_ids, axis=0)            # (B, T, E)
        x_tbe = jnp.transpose(emb, (1, 0, 2))                    # (T, B, E)

        # gate-padded parameters (each gate padded H -> Hp with zeros)
        w_ih_p = _pad_gates(self.w_ih.T, H, Hp, pad_rows=False)  # (E, 4Hp)
        w_hh_p = _pad_gates(self.w_hh.T, H, Hp, pad_rows=True)   # (Hp, 4Hp)
        bias_p = _pad_gates((self.b_ih + self.b_hh)[None, :], H, Hp,
                            pad_rows=False)[0]                   # (4Hp,)

        # one big (T*B, E) x (E, 4Hp) matmul instead of T tiny in-loop ones;
        # stream it into the recurrence in bf16 (halves the dominant HBM read)
        x_proj = jnp.dot(x_tbe.reshape(T * B, E), w_ih_p) + bias_p
        x_proj = x_proj.reshape(T, B, 4 * Hp).astype(jnp.bfloat16)
        x_proj = jnp.pad(x_proj, ((0, Tp - T), (0, Bp - B), (0, 0)))

        ot_p, ct_p = lstm_recurrence_pallas(
            x_proj, w_hh_p.astype(jnp.bfloat16),
            hp=Hp, tb=TB, tt=TT, t_actual=T)

        ot = jnp.transpose(ot_p[:T, :B, :H].astype(jnp.float32), (1, 0, 2))
        ht = ot[:, T - 1][None]                                  # (1, B, H) == last step
        ct = ct_p[:, :B, :H]                                     # (1, B, H)
        return ot, (ht, ct)


def _reference_lstm(x_ids, enc):
    """Pure-JAX f32 reference for a sanity check."""
    emb = jnp.take(enc.embedding, x_ids, axis=0)
    B, T, E = emb.shape
    H = enc.hidden_dim
    h = jnp.zeros((B, H), jnp.float32)
    c = jnp.zeros((B, H), jnp.float32)
    outs = []
    for t in range(T):
        gates = emb[:, t] @ enc.w_ih.T + h @ enc.w_hh.T + enc.b_ih + enc.b_hh
        i = jax.nn.sigmoid(gates[:, 0 * H:1 * H])
        f = jax.nn.sigmoid(gates[:, 1 * H:2 * H])
        g = jnp.tanh(gates[:, 2 * H:3 * H])
        o = jax.nn.sigmoid(gates[:, 3 * H:4 * H])
        c = f * c + i * g
        h = o * jnp.tanh(c)
        outs.append(h)
    return jnp.stack(outs, axis=1), h[None], c[None]


if __name__ == "__main__":
    VOCAB, EMBED, HIDDEN = 50, 32, 32
    B, T = 2, 8

    key = jax.random.PRNGKey(0)
    k_param, k_data = jax.random.split(key)
    enc = Seq2SeqAttentionEncoderPallas(VOCAB, EMBED, HIDDEN, k_param)

    x_ids = jax.random.randint(k_data, (B, T), 0, VOCAB, dtype=jnp.int32)

    ot, (ht, ct) = enc(x_ids)
    jax.block_until_ready((ot, ht, ct))

    # correctness check against pure-JAX f32 reference
    ot_ref, ht_ref, ct_ref = _reference_lstm(x_ids, enc)
    assert ot.shape == (B, T, HIDDEN)
    assert ht.shape == (1, B, HIDDEN) and ct.shape == (1, B, HIDDEN)
    # W_hh / x_proj / h / ot travel in bf16 -> loosened tolerance vs f32 ref.
    assert jnp.allclose(ot, ot_ref, atol=5e-2), "output mismatch"
    assert jnp.allclose(ht, ht_ref, atol=5e-2), "hidden mismatch"
    assert jnp.allclose(ct, ct_ref, atol=5e-2), "cell mismatch"

    print("KERNEL_OK")
</pallas_src>

<mosaic_0001>
module attributes {stable_mosaic.version = 11 : i64} {
  func.func @_lstm_recurrence_kernel(%arg0: i32, %arg1: i32, %arg2: memref<8x8x512xbf16, #tpu.memory_space<vmem>>, %arg3: memref<128x512xbf16, #tpu.memory_space<vmem>>, %arg4: memref<8x8x128xbf16, #tpu.memory_space<vmem>>, %arg5: memref<1x8x128xf32, #tpu.memory_space<vmem>>, %arg6: memref<8x128xbf16, #tpu.memory_space<vmem>>, %arg7: memref<8x128xf32, #tpu.memory_space<vmem>>) attributes {dimension_semantics = [#tpu.dimension_semantics<parallel>, #tpu.dimension_semantics<arbitrary>], iteration_bounds = array<i64: 1, 1>, scalar_prefetch = 0 : i64, scratch_operands = 2 : i64, tpu.core_type = #tpu.core_type<tc>, window_params = [{transform_indices = @transform_0, window_bounds = array<i64: 8, 8, 512>}, {pipeline_mode = #tpu.pipeline_mode<synchronous>, transform_indices = @transform_1, window_bounds = array<i64: 128, 512>}, {transform_indices = @transform_2, window_bounds = array<i64: 8, 8, 128>}, {transform_indices = @transform_3, window_bounds = array<i64: 1, 8, 128>}]} {
    %c0_i32 = arith.constant 0 : i32
    %0 = arith.cmpi eq, %arg1, %c0_i32 : i32
    %1 = arith.extui %0 : i1 to i32
    %c0_i32_0 = arith.constant 0 : i32
    %2 = arith.cmpi ne, %1, %c0_i32_0 : i32
    scf.if %2 {
      %cst_76 = arith.constant 0.000000e+00 : bf16
      %299 = vector.broadcast %cst_76 : bf16 to vector<8x128xbf16>
      %c0_77 = arith.constant 0 : index
      %c0_78 = arith.constant 0 : index
      %300 = vector.load %arg6[%c0_77, %c0_78] : memref<8x128xbf16, #tpu.memory_space<vmem>>, vector<8x128xbf16>
      tpu.vector_store %arg6[%c0_77, %c0_78], %299 {strides = array<i32>} : memref<8x128xbf16, #tpu.memory_space<vmem>>, vector<8x128xbf16>,
      %cst_79 = arith.constant 0.000000e+00 : f32
      %301 = vector.broadcast %cst_79 : f32 to vector<8x128xf32>
      %c0_80 = arith.constant 0 : index
      %c0_81 = arith.constant 0 : index
      %302 = vector.load %arg7[%c0_80, %c0_81] : memref<8x128xf32, #tpu.memory_space<vmem>>, vector<8x128xf32>
      tpu.vector_store %arg7[%c0_80, %c0_81], %301 {strides = array<i32>} : memref<8x128xf32, #tpu.memory_space<vmem>>, vector<8x128xf32>,
    } else {
    }
    %c0 = arith.constant 0 : index
    %c0_1 = arith.constant 0 : index
    %3 = vector.load %arg3[%c0, %c0_1] : memref<128x512xbf16, #tpu.memory_space<vmem>>, vector<128x512xbf16>
    %c0_2 = arith.constant 0 : index
    %c0_3 = arith.constant 0 : index
    %4 = vector.load %arg6[%c0_2, %c0_3] : memref<8x128xbf16, #tpu.memory_space<vmem>>, vector<8x128xbf16>
    %c0_4 = arith.constant 0 : index
    %c0_5 = arith.constant 0 : index
    %5 = vector.load %arg7[%c0_4, %c0_5] : memref<8x128xf32, #tpu.memory_space<vmem>>, vector<8x128xf32>
    %c0_i32_6 = arith.constant 0 : i32
    %6 = arith.index_cast %c0_i32_6 : i32 to index
    %c0_7 = arith.constant 0 : index
    %c0_8 = arith.constant 0 : index
    %7 = vector.load %arg2[%6, %c0_7, %c0_8] : memref<8x8x512xbf16, #tpu.memory_space<vmem>>, vector<1x8x512xbf16>
    %8 = vector.shape_cast %7 : vector<1x8x512xbf16> to vector<8x512xbf16>
    %9 = arith.extf %8 : vector<8x512xbf16> to vector<8x512xf32>
    %cst = arith.constant dense<0.000000e+00> : vector<8x512xf32>
    %10 = tpu.matmul %4, %3, %cst {dimension_numbers = #tpu.dot_dimension_numbers<[1], [0], [0], [1], [0, 0, 1, 1], [], []>} : vector<8x128xbf16>, vector<128x512xbf16>, vector<8x512xf32> -> vector<8x512xf32>
    %11 = arith.addf %9, %10 : vector<8x512xf32>
    %12 = vector.extract_strided_slice %11 {offsets = [0, 0], sizes = [8, 128], strides = [1, 1]} : vector<8x512xf32> to vector<8x128xf32>
    %13 = arith.negf %12 : vector<8x128xf32>
    %14 = math.exp %13 : vector<8x128xf32>
    %cst_9 = arith.constant 1.000000e+00 : f32
    %15 = vector.broadcast %cst_9 : f32 to vector<8x128xf32>
    %16 = arith.addf %15, %14 : vector<8x128xf32>
    %17 = arith.divf %15, %16 : vector<8x128xf32>
    %18 = vector.extract_strided_slice %11 {offsets = [0, 128], sizes = [8, 128], strides = [1, 1]} : vector<8x512xf32> to vector<8x128xf32>
    %19 = arith.negf %18 : vector<8x128xf32>
    %20 = math.exp %19 : vector<8x128xf32>
    %cst_10 = arith.constant 1.000000e+00 : f32
    %21 = vector.broadcast %cst_10 : f32 to vector<8x128xf32>
    %22 = arith.addf %21, %20 : vector<8x128xf32>
    %23 = arith.divf %21, %22 : vector<8x128xf32>
    %24 = vector.extract_strided_slice %11 {offsets = [0, 256], sizes = [8, 128], strides = [1, 1]} : vector<8x512xf32> to vector<8x128xf32>
    %25 = math.tanh %24 : vector<8x128xf32>
    %26 = vector.extract_strided_slice %11 {offsets = [0, 384], sizes = [8, 128], strides = [1, 1]} : vector<8x512xf32> to vector<8x128xf32>
    %27 = arith.negf %26 : vector<8x128xf32>
    %28 = math.exp %27 : vector<8x128xf32>
    %cst_11 = arith.constant 1.000000e+00 : f32
    %29 = vector.broadcast %cst_11 : f32 to vector<8x128xf32>
    %30 = arith.addf %29, %28 : vector<8x128xf32>
    %31 = arith.divf %29, %30 : vector<8x128xf32>
    %32 = arith.mulf %23, %5 : vector<8x128xf32>
    %33 = arith.mulf %17, %25 : vector<8x128xf32>
    %34 = arith.addf %32, %33 : vector<8x128xf32>
    %35 = math.tanh %34 : vector<8x128xf32>
    %36 = arith.mulf %31, %35 : vector<8x128xf32>
    %37 = arith.truncf %36 : vector<8x128xf32> to vector<8x128xbf16>
    %38 = arith.index_cast %c0_i32_6 : i32 to index
    %c0_12 = arith.constant 0 : index
    %c0_13 = arith.constant 0 : index
    %39 = vector.load %arg4[%38, %c0_12, %c0_13] : memref<8x8x128xbf16, #tpu.memory_space<vmem>>, vector<1x8x128xbf16>
    %40 = vector.shape_cast %39 : vector<1x8x128xbf16> to vector<8x128xbf16>
    %41 = vector.shape_cast %37 : vector<8x128xbf16> to vector<1x8x128xbf16>
    tpu.vector_store %arg4[%38, %c0_12, %c0_13], %41 {strides = array<i32>} : memref<8x8x128xbf16, #tpu.memory_space<vmem>>, vector<1x8x128xbf16>,
    %c1_i32 = arith.constant 1 : i32
    %42 = arith.index_cast %c1_i32 : i32 to index
    %c0_14 = arith.constant 0 : index
    %c0_15 = arith.constant 0 : index
    %43 = vector.load %arg2[%42, %c0_14, %c0_15] : memref<8x8x512xbf16, #tpu.memory_space<vmem>>, vector<1x8x512xbf16>
    %44 = vector.shape_cast %43 : vector<1x8x512xbf16> to vector<8x512xbf16>
    %45 = arith.extf %44 : vector<8x512xbf16> to vector<8x512xf32>
    %cst_16 = arith.constant dense<0.000000e+00> : vector<8x512xf32>
    %46 = tpu.matmul %37, %3, %cst_16 {dimension_numbers = #tpu.dot_dimension_numbers<[1], [0], [0], [1], [0, 0, 1, 1], [], []>} : vector<8x128xbf16>, vector<128x512xbf16>, vector<8x512xf32> -> vector<8x512xf32>
    %47 = arith.addf %45, %46 : vector<8x512xf32>
    %48 = vector.extract_strided_slice %47 {offsets = [0, 0], sizes = [8, 128], strides = [1, 1]} : vector<8x512xf32> to vector<8x128xf32>
    %49 = arith.negf %48 : vector<8x128xf32>
    %50 = math.exp %49 : vector<8x128xf32>
    %cst_17 = arith.constant 1.000000e+00 : f32
    %51 = vector.broadcast %cst_17 : f32 to vector<8x128xf32>
    %52 = arith.addf %51, %50 : vector<8x128xf32>
    %53 = arith.divf %51, %52 : vector<8x128xf32>
    %54 = vector.extract_strided_slice %47 {offsets = [0, 128], sizes = [8, 128], strides = [1, 1]} : vector<8x512xf32> to vector<8x128xf32>
    %55 = arith.negf %54 : vector<8x128xf32>
    %56 = math.exp %55 : vector<8x128xf32>
    %cst_18 = arith.constant 1.000000e+00 : f32
    %57 = vector.broadcast %cst_18 : f32 to vector<8x128xf32>
    %58 = arith.addf %57, %56 : vector<8x128xf32>
    %59 = arith.divf %57, %58 : vector<8x128xf32>
    %60 = vector.extract_strided_slice %47 {offsets = [0, 256], sizes = [8, 128], strides = [1, 1]} : vector<8x512xf32> to vector<8x128xf32>
    %61 = math.tanh %60 : vector<8x128xf32>
    %62 = vector.extract_strided_slice %47 {offsets = [0, 384], sizes = [8, 128], strides = [1, 1]} : vector<8x512xf32> to vector<8x128xf32>
    %63 = arith.negf %62 : vector<8x128xf32>
    %64 = math.exp %63 : vector<8x128xf32>
    %cst_19 = arith.constant 1.000000e+00 : f32
    %65 = vector.broadcast %cst_19 : f32 to vector<8x128xf32>
    %66 = arith.addf %65, %64 : vector<8x128xf32>
    %67 = arith.divf %65, %66 : vector<8x128xf32>
    %68 = arith.mulf %59, %34 : vector<8x128xf32>
    %69 = arith.mulf %53, %61 : vector<8x128xf32>
    %70 = arith.addf %68, %69 : vector<8x128xf32>
    %71 = math.tanh %70 : vector<8x128xf32>
    %72 = arith.mulf %67, %71 : vector<8x128xf32>
    %73 = arith.truncf %72 : vector<8x128xf32> to vector<8x128xbf16>
    %74 = arith.index_cast %c1_i32 : i32 to index
    %c0_20 = arith.constant 0 : index
    %c0_21 = arith.constant 0 : index
    %75 = vector.load %arg4[%74, %c0_20, %c0_21] : memref<8x8x128xbf16, #tpu.memory_space<vmem>>, vector<1x8x128xbf16>
    %76 = vector.shape_cast %75 : vector<1x8x128xbf16> to vector<8x128xbf16>
    %77 = vector.shape_cast %73 : vector<8x128xbf16> to vector<1x8x128xbf16>
    tpu.vector_store %arg4[%74, %c0_20, %c0_21], %77 {strides = array<i32>} : memref<8x8x128xbf16, #tpu.memory_space<vmem>>, vector<1x8x128xbf16>,
    %c2_i32 = arith.constant 2 : i32
    %78 = arith.index_cast %c2_i32 : i32 to index
    %c0_22 = arith.constant 0 : index
    %c0_23 = arith.constant 0 : index
    %79 = vector.load %arg2[%78, %c0_22, %c0_23] : memref<8x8x512xbf16, #tpu.memory_space<vmem>>, vector<1x8x512xbf16>
    %80 = vector.shape_cast %79 : vector<1x8x512xbf16> to vector<8x512xbf16>
    %81 = arith.extf %80 : vector<8x512xbf16> to vector<8x512xf32>
    %cst_24 = arith.constant dense<0.000000e+00> : vector<8x512xf32>
    %82 = tpu.matmul %73, %3, %cst_24 {dimension_numbers = #tpu.dot_dimension_numbers<[1], [0], [0], [1], [0, 0, 1, 1], [], []>} : vector<8x128xbf16>, vector<128x512xbf16>, vector<8x512xf32> -> vector<8x512xf32>
    %83 = arith.addf %81, %82 : vector<8x512xf32>
    %84 = vector.extract_strided_slice %83 {offsets = [0, 0], sizes = [8, 128], strides = [1, 1]} : vector<8x512xf32> to vector<8x128xf32>
    %85 = arith.negf %84 : vector<8x128xf32>
    %86 = math.exp %85 : vector<8x128xf32>
    %cst_25 = arith.constant 1.000000e+00 : f32
    %87 = vector.broadcast %cst_25 : f32 to vector<8x128xf32>
    %88 = arith.addf %87, %86 : vector<8x128xf32>
    %89 = arith.divf %87, %88 : vector<8x128xf32>
    %90 = vector.extract_strided_slice %83 {offsets = [0, 128], sizes = [8, 128], strides = [1, 1]} : vector<8x512xf32> to vector<8x128xf32>
    %91 = arith.negf %90 : vector<8x128xf32>
    %92 = math.exp %91 : vector<8x128xf32>
    %cst_26 = arith.constant 1.000000e+00 : f32
    %93 = vector.broadcast %cst_26 : f32 to vector<8x128xf32>
    %94 = arith.addf %93, %92 : vector<8x128xf32>
    %95 = arith.divf %93, %94 : vector<8x128xf32>
    %96 = vector.extract_strided_slice %83 {offsets = [0, 256], sizes = [8, 128], strides = [1, 1]} : vector<8x512xf32> to vector<8x128xf32>
    %97 = math.tanh %96 : vector<8x128xf32>
    %98 = vector.extract_strided_slice %83 {offsets = [0, 384], sizes = [8, 128], strides = [1, 1]} : vector<8x512xf32> to vector<8x128xf32>
    %99 = arith.negf %98 : vector<8x128xf32>
    %100 = math.exp %99 : vector<8x128xf32>
    %cst_27 = arith.constant 1.000000e+00 : f32
    %101 = vector.broadcast %cst_27 : f32 to vector<8x128xf32>
    %102 = arith.addf %101, %100 : vector<8x128xf32>
    %103 = arith.divf %101, %102 : vector<8x128xf32>
    %104 = arith.mulf %95, %70 : vector<8x128xf32>
    %105 = arith.mulf %89, %97 : vector<8x128xf32>
    %106 = arith.addf %104, %105 : vector<8x128xf32>
    %107 = math.tanh %106 : vector<8x128xf32>
    %108 = arith.mulf %103, %107 : vector<8x128xf32>
    %109 = arith.truncf %108 : vector<8x128xf32> to vector<8x128xbf16>
    %110 = arith.index_cast %c2_i32 : i32 to index
    %c0_28 = arith.constant 0 : index
    %c0_29 = arith.constant 0 : index
    %111 = vector.load %arg4[%110, %c0_28, %c0_29] : memref<8x8x128xbf16, #tpu.memory_space<vmem>>, vector<1x8x128xbf16>
    %112 = vector.shape_cast %111 : vector<1x8x128xbf16> to vector<8x128xbf16>
    %113 = vector.shape_cast %109 : vector<8x128xbf16> to vector<1x8x128xbf16>
    tpu.vector_store %arg4[%110, %c0_28, %c0_29], %113 {strides = array<i32>} : memref<8x8x128xbf16, #tpu.memory_space<vmem>>, vector<1x8x128xbf16>,
    %c3_i32 = arith.constant 3 : i32
    %114 = arith.index_cast %c3_i32 : i32 to index
    %c0_30 = arith.constant 0 : index
    %c0_31 = arith.constant 0 : index
    %115 = vector.load %arg2[%114, %c0_30, %c0_31] : memref<8x8x512xbf16, #tpu.memory_space<vmem>>, vector<1x8x512xbf16>
    %116 = vector.shape_cast %115 : vector<1x8x512xbf16> to vector<8x512xbf16>
    %117 = arith.extf %116 : vector<8x512xbf16> to vector<8x512xf32>
    %cst_32 = arith.constant dense<0.000000e+00> : vector<8x512xf32>
    %118 = tpu.matmul %109, %3, %cst_32 {dimension_numbers = #tpu.dot_dimension_numbers<[1], [0], [0], [1], [0, 0, 1, 1], [], []>} : vector<8x128xbf16>, vector<128x512xbf16>, vector<8x512xf32> -> vector<8x512xf32>
    %119 = arith.addf %117, %118 : vector<8x512xf32>
    %120 = vector.extract_strided_slice %119 {offsets = [0, 0], sizes = [8, 128], strides = [1, 1]} : vector<8x512xf32> to vector<8x128xf32>
    %121 = arith.negf %120 : vector<8x128xf32>
    %122 = math.exp %121 : vector<8x128xf32>
    %cst_33 = arith.constant 1.000000e+00 : f32
    %123 = vector.broadcast %cst_33 : f32 to vector<8x128xf32>
    %124 = arith.addf %123, %122 : vector<8x128xf32>
    %125 = arith.divf %123, %124 : vector<8x128xf32>
    %126 = vector.extract_strided_slice %119 {offsets = [0, 128], sizes = [8, 128], strides = [1, 1]} : vector<8x512xf32> to vector<8x128xf32>
    %127 = arith.negf %126 : vector<8x128xf32>
    %128 = math.exp %127 : vector<8x128xf32>
    %cst_34 = arith.constant 1.000000e+00 : f32
    %129 = vector.broadcast %cst_34 : f32 to vector<8x128xf32>
    %130 = arith.addf %129, %128 : vector<8x128xf32>
    %131 = arith.divf %129, %130 : vector<8x128xf32>
    %132 = vector.extract_strided_slice %119 {offsets = [0, 256], sizes = [8, 128], strides = [1, 1]} : vector<8x512xf32> to vector<8x128xf32>
    %133 = math.tanh %132 : vector<8x128xf32>
    %134 = vector.extract_strided_slice %119 {offsets = [0, 384], sizes = [8, 128], strides = [1, 1]} : vector<8x512xf32> to vector<8x128xf32>
    %135 = arith.negf %134 : vector<8x128xf32>
    %136 = math.exp %135 : vector<8x128xf32>
    %cst_35 = arith.constant 1.000000e+00 : f32
    %137 = vector.broadcast %cst_35 : f32 to vector<8x128xf32>
    %138 = arith.addf %137, %136 : vector<8x128xf32>
    %139 = arith.divf %137, %138 : vector<8x128xf32>
    %140 = arith.mulf %131, %106 : vector<8x128xf32>
    %141 = arith.mulf %125, %133 : vector<8x128xf32>
    %142 = arith.addf %140, %141 : vector<8x128xf32>
    %143 = math.tanh %142 : vector<8x128xf32>
    %144 = arith.mulf %139, %143 : vector<8x128xf32>
    %145 = arith.truncf %144 : vector<8x128xf32> to vector<8x128xbf16>
    %146 = arith.index_cast %c3_i32 : i32 to index
    %c0_36 = arith.constant 0 : index
    %c0_37 = arith.constant 0 : index
    %147 = vector.load %arg4[%146, %c0_36, %c0_37] : memref<8x8x128xbf16, #tpu.memory_space<vmem>>, vector<1x8x128xbf16>
    %148 = vector.shape_cast %147 : vector<1x8x128xbf16> to vector<8x128xbf16>
    %149 = vector.shape_cast %145 : vector<8x128xbf16> to vector<1x8x128xbf16>
    tpu.vector_store %arg4[%146, %c0_36, %c0_37], %149 {strides = array<i32>} : memref<8x8x128xbf16, #tpu.memory_space<vmem>>, vector<1x8x128xbf16>,
    %c4_i32 = arith.constant 4 : i32
    %150 = arith.index_cast %c4_i32 : i32 to index
    %c0_38 = arith.constant 0 : index
    %c0_39 = arith.constant 0 : index
    %151 = vector.load %arg2[%150, %c0_38, %c0_39] : memref<8x8x512xbf16, #tpu.memory_space<vmem>>, vector<1x8x512xbf16>
    %152 = vector.shape_cast %151 : vector<1x8x512xbf16> to vector<8x512xbf16>
    %153 = arith.extf %152 : vector<8x512xbf16> to vector<8x512xf32>
    %cst_40 = arith.constant dense<0.000000e+00> : vector<8x512xf32>
    %154 = tpu.matmul %145, %3, %cst_40 {dimension_numbers = #tpu.dot_dimension_numbers<[1], [0], [0], [1], [0, 0, 1, 1], [], []>} : vector<8x128xbf16>, vector<128x512xbf16>, vector<8x512xf32> -> vector<8x512xf32>
    %155 = arith.addf %153, %154 : vector<8x512xf32>
    %156 = vector.extract_strided_slice %155 {offsets = [0, 0], sizes = [8, 128], strides = [1, 1]} : vector<8x512xf32> to vector<8x128xf32>
    %157 = arith.negf %156 : vector<8x128xf32>
    %158 = math.exp %157 : vector<8x128xf32>
    %cst_41 = arith.constant 1.000000e+00 : f32
    %159 = vector.broadcast %cst_41 : f32 to vector<8x128xf32>
    %160 = arith.addf %159, %158 : vector<8x128xf32>
    %161 = arith.divf %159, %160 : vector<8x128xf32>
    %162 = vector.extract_strided_slice %155 {offsets = [0, 128], sizes = [8, 128], strides = [1, 1]} : vector<8x512xf32> to vector<8x128xf32>
    %163 = arith.negf %162 : vector<8x128xf32>
    %164 = math.exp %163 : vector<8x128xf32>
    %cst_42 = arith.constant 1.000000e+00 : f32
    %165 = vector.broadcast %cst_42 : f32 to vector<8x128xf32>
    %166 = arith.addf %165, %164 : vector<8x128xf32>
    %167 = arith.divf %165, %166 : vector<8x128xf32>
    %168 = vector.extract_strided_slice %155 {offsets = [0, 256], sizes = [8, 128], strides = [1, 1]} : vector<8x512xf32> to vector<8x128xf32>
    %169 = math.tanh %168 : vector<8x128xf32>
    %170 = vector.extract_strided_slice %155 {offsets = [0, 384], sizes = [8, 128], strides = [1, 1]} : vector<8x512xf32> to vector<8x128xf32>
    %171 = arith.negf %170 : vector<8x128xf32>
    %172 = math.exp %171 : vector<8x128xf32>
    %cst_43 = arith.constant 1.000000e+00 : f32
    %173 = vector.broadcast %cst_43 : f32 to vector<8x128xf32>
    %174 = arith.addf %173, %172 : vector<8x128xf32>
    %175 = arith.divf %173, %174 : vector<8x128xf32>
    %176 = arith.mulf %167, %142 : vector<8x128xf32>
    %177 = arith.mulf %161, %169 : vector<8x128xf32>
    %178 = arith.addf %176, %177 : vector<8x128xf32>
    %179 = math.tanh %178 : vector<8x128xf32>
    %180 = arith.mulf %175, %179 : vector<8x128xf32>
    %181 = arith.truncf %180 : vector<8x128xf32> to vector<8x128xbf16>
    %182 = arith.index_cast %c4_i32 : i32 to index
    %c0_44 = arith.constant 0 : index
    %c0_45 = arith.constant 0 : index
    %183 = vector.load %arg4[%182, %c0_44, %c0_45] : memref<8x8x128xbf16, #tpu.memory_space<vmem>>, vector<1x8x128xbf16>
    %184 = vector.shape_cast %183 : vector<1x8x128xbf16> to vector<8x128xbf16>
    %185 = vector.shape_cast %181 : vector<8x128xbf16> to vector<1x8x128xbf16>
    tpu.vector_store %arg4[%182, %c0_44, %c0_45], %185 {strides = array<i32>} : memref<8x8x128xbf16, #tpu.memory_space<vmem>>, vector<1x8x128xbf16>,
    %c5_i32 = arith.constant 5 : i32
    %186 = arith.index_cast %c5_i32 : i32 to index
    %c0_46 = arith.constant 0 : index
    %c0_47 = arith.constant 0 : index
    %187 = vector.load %arg2[%186, %c0_46, %c0_47] : memref<8x8x512xbf16, #tpu.memory_space<vmem>>, vector<1x8x512xbf16>
    %188 = vector.shape_cast %187 : vector<1x8x512xbf16> to vector<8x512xbf16>
    %189 = arith.extf %188 : vector<8x512xbf16> to vector<8x512xf32>
    %cst_48 = arith.constant dense<0.000000e+00> : vector<8x512xf32>
    %190 = tpu.matmul %181, %3, %cst_48 {dimension_numbers = #tpu.dot_dimension_numbers<[1], [0], [0], [1], [0, 0, 1, 1], [], []>} : vector<8x128xbf16>, vector<128x512xbf16>, vector<8x512xf32> -> vector<8x512xf32>
    %191 = arith.addf %189, %190 : vector<8x512xf32>
    %192 = vector.extract_strided_slice %191 {offsets = [0, 0], sizes = [8, 128], strides = [1, 1]} : vector<8x512xf32> to vector<8x128xf32>
    %193 = arith.negf %192 : vector<8x128xf32>
    %194 = math.exp %193 : vector<8x128xf32>
    %cst_49 = arith.constant 1.000000e+00 : f32
    %195 = vector.broadcast %cst_49 : f32 to vector<8x128xf32>
    %196 = arith.addf %195, %194 : vector<8x128xf32>
    %197 = arith.divf %195, %196 : vector<8x128xf32>
    %198 = vector.extract_strided_slice %191 {offsets = [0, 128], sizes = [8, 128], strides = [1, 1]} : vector<8x512xf32> to vector<8x128xf32>
    %199 = arith.negf %198 : vector<8x128xf32>
    %200 = math.exp %199 : vector<8x128xf32>
    %cst_50 = arith.constant 1.000000e+00 : f32
    %201 = vector.broadcast %cst_50 : f32 to vector<8x128xf32>
    %202 = arith.addf %201, %200 : vector<8x128xf32>
    %203 = arith.divf %201, %202 : vector<8x128xf32>
    %204 = vector.extract_strided_slice %191 {offsets = [0, 256], sizes = [8, 128], strides = [1, 1]} : vector<8x512xf32> to vector<8x128xf32>
    %205 = math.tanh %204 : vector<8x128xf32>
    %206 = vector.extract_strided_slice %191 {offsets = [0, 384], sizes = [8, 128], strides = [1, 1]} : vector<8x512xf32> to vector<8x128xf32>
    %207 = arith.negf %206 : vector<8x128xf32>
    %208 = math.exp %207 : vector<8x128xf32>
    %cst_51 = arith.constant 1.000000e+00 : f32
    %209 = vector.broadcast %cst_51 : f32 to vector<8x128xf32>
    %210 = arith.addf %209, %208 : vector<8x128xf32>
    %211 = arith.divf %209, %210 : vector<8x128xf32>
    %212 = arith.mulf %203, %178 : vector<8x128xf32>
    %213 = arith.mulf %197, %205 : vector<8x128xf32>
    %214 = arith.addf %212, %213 : vector<8x128xf32>
    %215 = math.tanh %214 : vector<8x128xf32>
    %216 = arith.mulf %211, %215 : vector<8x128xf32>
    %217 = arith.truncf %216 : vector<8x128xf32> to vector<8x128xbf16>
    %218 = arith.index_cast %c5_i32 : i32 to index
    %c0_52 = arith.constant 0 : index
    %c0_53 = arith.constant 0 : index
    %219 = vector.load %arg4[%218, %c0_52, %c0_53] : memref<8x8x128xbf16, #tpu.memory_space<vmem>>, vector<1x8x128xbf16>
    %220 = vector.shape_cast %219 : vector<1x8x128xbf16> to vector<8x128xbf16>
    %221 = vector.shape_cast %217 : vector<8x128xbf16> to vector<1x8x128xbf16>
    tpu.vector_store %arg4[%218, %c0_52, %c0_53], %221 {strides = array<i32>} : memref<8x8x128xbf16, #tpu.memory_space<vmem>>, vector<1x8x128xbf16>,
    %c6_i32 = arith.constant 6 : i32
    %222 = arith.index_cast %c6_i32 : i32 to index
    %c0_54 = arith.constant 0 : index
    %c0_55 = arith.constant 0 : index
    %223 = vector.load %arg2[%222, %c0_54, %c0_55] : memref<8x8x512xbf16, #tpu.memory_space<vmem>>, vector<1x8x512xbf16>
    %224 = vector.shape_cast %223 : vector<1x8x512xbf16> to vector<8x512xbf16>
    %225 = arith.extf %224 : vector<8x512xbf16> to vector<8x512xf32>
    %cst_56 = arith.constant dense<0.000000e+00> : vector<8x512xf32>
    %226 = tpu.matmul %217, %3, %cst_56 {dimension_numbers = #tpu.dot_dimension_numbers<[1], [0], [0], [1], [0, 0, 1, 1], [], []>} : vector<8x128xbf16>, vector<128x512xbf16>, vector<8x512xf32> -> vector<8x512xf32>
    %227 = arith.addf %225, %226 : vector<8x512xf32>
    %228 = vector.extract_strided_slice %227 {offsets = [0, 0], sizes = [8, 128], strides = [1, 1]} : vector<8x512xf32> to vector<8x128xf32>
    %229 = arith.negf %228 : vector<8x128xf32>
    %230 = math.exp %229 : vector<8x128xf32>
    %cst_57 = arith.constant 1.000000e+00 : f32
    %231 = vector.broadcast %cst_57 : f32 to vector<8x128xf32>
    %232 = arith.addf %231, %230 : vector<8x128xf32>
    %233 = arith.divf %231, %232 : vector<8x128xf32>
    %234 = vector.extract_strided_slice %227 {offsets = [0, 128], sizes = [8, 128], strides = [1, 1]} : vector<8x512xf32> to vector<8x128xf32>
    %235 = arith.negf %234 : vector<8x128xf32>
    %236 = math.exp %235 : vector<8x128xf32>
    %cst_58 = arith.constant 1.000000e+00 : f32
    %237 = vector.broadcast %cst_58 : f32 to vector<8x128xf32>
    %238 = arith.addf %237, %236 : vector<8x128xf32>
    %239 = arith.divf %237, %238 : vector<8x128xf32>
    %240 = vector.extract_strided_slice %227 {offsets = [0, 256], sizes = [8, 128], strides = [1, 1]} : vector<8x512xf32> to vector<8x128xf32>
    %241 = math.tanh %240 : vector<8x128xf32>
    %242 = vector.extract_strided_slice %227 {offsets = [0, 384], sizes = [8, 128], strides = [1, 1]} : vector<8x512xf32> to vector<8x128xf32>
    %243 = arith.negf %242 : vector<8x128xf32>
    %244 = math.exp %243 : vector<8x128xf32>
    %cst_59 = arith.constant 1.000000e+00 : f32
    %245 = vector.broadcast %cst_59 : f32 to vector<8x128xf32>
    %246 = arith.addf %245, %244 : vector<8x128xf32>
    %247 = arith.divf %245, %246 : vector<8x128xf32>
    %248 = arith.mulf %239, %214 : vector<8x128xf32>
    %249 = arith.mulf %233, %241 : vector<8x128xf32>
    %250 = arith.addf %248, %249 : vector<8x128xf32>
    %251 = math.tanh %250 : vector<8x128xf32>
    %252 = arith.mulf %247, %251 : vector<8x128xf32>
    %253 = arith.truncf %252 : vector<8x128xf32> to vector<8x128xbf16>
    %254 = arith.index_cast %c6_i32 : i32 to index
    %c0_60 = arith.constant 0 : index
    %c0_61 = arith.constant 0 : index
    %255 = vector.load %arg4[%254, %c0_60, %c0_61] : memref<8x8x128xbf16, #tpu.memory_space<vmem>>, vector<1x8x128xbf16>
    %256 = vector.shape_cast %255 : vector<1x8x128xbf16> to vector<8x128xbf16>
    %257 = vector.shape_cast %253 : vector<8x128xbf16> to vector<1x8x128xbf16>
    tpu.vector_store %arg4[%254, %c0_60, %c0_61], %257 {strides = array<i32>} : memref<8x8x128xbf16, #tpu.memory_space<vmem>>, vector<1x8x128xbf16>,
    %c7_i32 = arith.constant 7 : i32
    %258 = arith.index_cast %c7_i32 : i32 to index
    %c0_62 = arith.constant 0 : index
    %c0_63 = arith.constant 0 : index
    %259 = vector.load %arg2[%258, %c0_62, %c0_63] : memref<8x8x512xbf16, #tpu.memory_space<vmem>>, vector<1x8x512xbf16>
    %260 = vector.shape_cast %259 : vector<1x8x512xbf16> to vector<8x512xbf16>
    %261 = arith.extf %260 : vector<8x512xbf16> to vector<8x512xf32>
    %cst_64 = arith.constant dense<0.000000e+00> : vector<8x512xf32>
    %262 = tpu.matmul %253, %3, %cst_64 {dimension_numbers = #tpu.dot_dimension_numbers<[1], [0], [0], [1], [0, 0, 1, 1], [], []>} : vector<8x128xbf16>, vector<128x512xbf16>, vector<8x512xf32> -> vector<8x512xf32>
    %263 = arith.addf %261, %262 : vector<8x512xf32>
    %264 = vector.extract_strided_slice %263 {offsets = [0, 0], sizes = [8, 128], strides = [1, 1]} : vector<8x512xf32> to vector<8x128xf32>
    %265 = arith.negf %264 : vector<8x128xf32>
    %266 = math.exp %265 : vector<8x128xf32>
    %cst_65 = arith.constant 1.000000e+00 : f32
    %267 = vector.broadcast %cst_65 : f32 to vector<8x128xf32>
    %268 = arith.addf %267, %266 : vector<8x128xf32>
    %269 = arith.divf %267, %268 : vector<8x128xf32>
    %270 = vector.extract_strided_slice %263 {offsets = [0, 128], sizes = [8, 128], strides = [1, 1]} : vector<8x512xf32> to vector<8x128xf32>
    %271 = arith.negf %270 : vector<8x128xf32>
    %272 = math.exp %271 : vector<8x128xf32>
    %cst_66 = arith.constant 1.000000e+00 : f32
    %273 = vector.broadcast %cst_66 : f32 to vector<8x128xf32>
    %274 = arith.addf %273, %272 : vector<8x128xf32>
    %275 = arith.divf %273, %274 : vector<8x128xf32>
    %276 = vector.extract_strided_slice %263 {offsets = [0, 256], sizes = [8, 128], strides = [1, 1]} : vector<8x512xf32> to vector<8x128xf32>
    %277 = math.tanh %276 : vector<8x128xf32>
    %278 = vector.extract_strided_slice %263 {offsets = [0, 384], sizes = [8, 128], strides = [1, 1]} : vector<8x512xf32> to vector<8x128xf32>
    %279 = arith.negf %278 : vector<8x128xf32>
    %280 = math.exp %279 : vector<8x128xf32>
    %cst_67 = arith.constant 1.000000e+00 : f32
    %281 = vector.broadcast %cst_67 : f32 to vector<8x128xf32>
    %282 = arith.addf %281, %280 : vector<8x128xf32>
    %283 = arith.divf %281, %282 : vector<8x128xf32>
    %284 = arith.mulf %275, %250 : vector<8x128xf32>
    %285 = arith.mulf %269, %277 : vector<8x128xf32>
    %286 = arith.addf %284, %285 : vector<8x128xf32>
    %287 = math.tanh %286 : vector<8x128xf32>
    %288 = arith.mulf %283, %287 : vector<8x128xf32>
    %289 = arith.truncf %288 : vector<8x128xf32> to vector<8x128xbf16>
    %290 = arith.index_cast %c7_i32 : i32 to index
    %c0_68 = arith.constant 0 : index
    %c0_69 = arith.constant 0 : index
    %291 = vector.load %arg4[%290, %c0_68, %c0_69] : memref<8x8x128xbf16, #tpu.memory_space<vmem>>, vector<1x8x128xbf16>
    %292 = vector.shape_cast %291 : vector<1x8x128xbf16> to vector<8x128xbf16>
    %293 = vector.shape_cast %289 : vector<8x128xbf16> to vector<1x8x128xbf16>
    tpu.vector_store %arg4[%290, %c0_68, %c0_69], %293 {strides = array<i32>} : memref<8x8x128xbf16, #tpu.memory_space<vmem>>, vector<1x8x128xbf16>,
    %c8_i32 = arith.constant 8 : i32
    %c0_70 = arith.constant 0 : index
    %c0_71 = arith.constant 0 : index
    %294 = vector.load %arg6[%c0_70, %c0_71] : memref<8x128xbf16, #tpu.memory_space<vmem>>, vector<8x128xbf16>
    tpu.vector_store %arg6[%c0_70, %c0_71], %289 {strides = array<i32>} : memref<8x128xbf16, #tpu.memory_space<vmem>>, vector<8x128xbf16>,
    %c0_72 = arith.constant 0 : index
    %c0_73 = arith.constant 0 : index
    %295 = vector.load %arg7[%c0_72, %c0_73] : memref<8x128xf32, #tpu.memory_space<vmem>>, vector<8x128xf32>
    tpu.vector_store %arg7[%c0_72, %c0_73], %286 {strides = array<i32>} : memref<8x128xf32, #tpu.memory_space<vmem>>, vector<8x128xf32>,
    %c0_i32_74 = arith.constant 0 : i32
    %296 = arith.cmpi eq, %arg1, %c0_i32_74 : i32
    %297 = arith.extui %296 : i1 to i32
    %c0_i32_75 = arith.constant 0 : i32
    %298 = arith.cmpi ne, %297, %c0_i32_75 : i32
    scf.if %298 {
      %c0_76 = arith.constant 0 : index
      %c0_77 = arith.constant 0 : index
      %299 = vector.load %arg7[%c0_76, %c0_77] : memref<8x128xf32, #tpu.memory_space<vmem>>, vector<8x128xf32>
      %c0_78 = arith.constant 0 : index
      %c0_79 = arith.constant 0 : index
      %c0_80 = arith.constant 0 : index
      %300 = vector.load %arg5[%c0_78, %c0_79, %c0_80] : memref<1x8x128xf32, #tpu.memory_space<vmem>>, vector<1x8x128xf32>
      %301 = vector.shape_cast %300 : vector<1x8x128xf32> to vector<8x128xf32>
      %302 = vector.shape_cast %299 : vector<8x128xf32> to vector<1x8x128xf32>
      tpu.vector_store %arg5[%c0_78, %c0_79, %c0_80], %302 {strides = array<i32>} : memref<1x8x128xf32, #tpu.memory_space<vmem>>, vector<1x8x128xf32>,
    } else {
    }
    return
  }
  func.func @transform_0(%arg0: i32, %arg1: i32) -> (i32, i32, i32) {
    %c0_i32 = arith.constant 0 : i32
    %c0_i32_0 = arith.constant 0 : i32
    return %arg1, %arg0, %c0_i32 : i32, i32, i32
  }
  func.func @transform_1(%arg0: i32, %arg1: i32) -> (i32, i32) {
    %c0_i32 = arith.constant 0 : i32
    %c0_i32_0 = arith.constant 0 : i32
    %c0_i32_1 = arith.constant 0 : i32
    return %c0_i32, %c0_i32_0 : i32, i32
  }
  func.func @transform_2(%arg0: i32, %arg1: i32) -> (i32, i32, i32) {
    %c0_i32 = arith.constant 0 : i32
    %c0_i32_0 = arith.constant 0 : i32
    return %arg1, %arg0, %c0_i32 : i32, i32, i32
  }
  func.func @transform_3(%arg0: i32, %arg1: i32) -> (i32, i32, i32) {
    %c0_i32 = arith.constant 0 : i32
    %c0_i32_0 = arith.constant 0 : i32
    %c0_i32_1 = arith.constant 0 : i32
    return %c0_i32, %arg0, %c0_i32_0 : i32, i32, i32
  }
}

</mosaic_0001>

<llo_original>
// kernel: tpu_custom_call.1
$region0: #{tpu_custom_call.1}
  #allocation0 [shape = 'u32[]', space=smem, size = 0x4, offset = 0x4, fixed_abs, tag = 'smem constant byte address 0x4 - core index']
  #allocation1 [shape = 'u32[144,128]{1,0:T(1,128)}', space=vmem, size = 0x12000, scoped, tag = 'internal scratch']
  #allocation2 [shape = 'bf16[8,128]{1,0:T(8,128)(2,1)}', space=vmem, size = 0x800, scoped, tag = 'scratch operand']
  #allocation3 [shape = 'f32[8,128]{1,0:T(8,128)}', space=vmem, size = 0x1000, scoped, tag = 'scratch operand']
  %s0 = inlined_call_operand.hbm [shape: bf16[8,8,512], index: 0, kind: input, shape index: {}]
  %s1 = inlined_call_operand.hbm [shape: bf16[128,512], index: 1, kind: input, shape index: {}]
  %s2 = inlined_call_operand.hbm [shape: bf16[8,8,128], index: 2, kind: output, shape index: {0}]
  %s3 = inlined_call_operand.hbm [shape: f32[1,8,128], index: 3, kind: output, shape index: {1}]
  %4 = xla_tuple %s2, %s3
  %s5 = sld [smem:[#allocation0]]
  $region42: #{tpu_custom_call.1} parent=0
    _
  %s7 = ssub.s32 1, %s5
  %s8 = scalar_select 0, %s7, %s5
  $region1: #{tpu_custom_call.1} parent=0
    #allocation4 [shape = 'u8[65536]{0}', space=vmem, size = 0x10000, scoped, tag = 'input window, operand 0, single buffered']
    #allocation5 [shape = 's32[1]{0}', space=sflag, size = 0x4, scoped, tag = 'scoped memory for tpu_custom_call.1']
    #allocation6 [shape = 's32[1]{0}', space=sflag, size = 0x4, scoped, tag = 'scoped memory for tpu_custom_call.1']
    #allocation7 [shape = 'u8[131072]{0}', space=vmem, size = 0x20000, scoped, tag = 'input window, operand 1, single buffered']
    #allocation8 [shape = 's32[1]{0}', space=sflag, size = 0x4, scoped, tag = 'scoped memory for tpu_custom_call.1']
    #allocation9 [shape = 'u8[16384]{0}', space=vmem, size = 0x4000, scoped, tag = 'output window, operand 0, single buffered']
    #allocation10 [shape = 'u8[4096]{0}', space=vmem, size = 0x1000, scoped, tag = 'output window, operand 1, single buffered']
    #allocation11 [shape = 's32[1]{0}', space=sflag, size = 0x4, scoped, tag = 'scoped memory for tpu_custom_call.1']
    %9 = vsyncpa [#allocation5], 0
    %10 = vsyncpa [#allocation8], 0
    %11 = vsyncpa [#allocation6], 0
    %12 = vsyncpa [#allocation11], 0
    // Predicated region
    $region2: #{tpu_custom_call.1} parent=1 // pred_check
      _
    $region3: #{tpu_custom_call.1} parent=1 // pred_check_branch
      %14 = sbr.rel (0) target = $region5
    $region4: #{tpu_custom_call.1} parent=1 // pred_region
      %s16 = ssub.s32 2048, 2048
      %17 = vsyncadd [#allocation5], %s16
      %s18 = sshll.u32 [#allocation4], 4
      %s19 = int_to_ptr.vmem [resolvable:$true] %s18
      %24 = dma.hbm_to_vmem [thread:$0]  %s0, 2048, %s19, [#allocation5], 256, 256, 16
    $region5: #{tpu_custom_call.1} parent=1 // pred_fallthru
      _
    // Predicated region
    $region6: #{tpu_custom_call.1} parent=1 // pred_check
      _
    $region7: #{tpu_custom_call.1} parent=1 // pred_check_branch
      %26 = sbr.rel (0) target = $region9
    $region8: #{tpu_custom_call.1} parent=1 // pred_region
      %s28 = ssub.s32 4096, 4096
      %29 = vsyncadd [#allocation8], %s28
      %s30 = sshll.u32 [#allocation7], 4
      %s31 = int_to_ptr.vmem [resolvable:$true] %s30
      %36 = dma.hbm_to_vmem [thread:$0]  %s1, 4096, %s31, [#allocation8], 256, 256, 16
    $region9: #{tpu_custom_call.1} parent=1 // pred_fallthru
      _
    // Predicated region
    $region10: #{tpu_custom_call.1} parent=1 // pred_check
      _
    $region11: #{tpu_custom_call.1} parent=1 // pred_check_branch
      %38 = sbr.rel (0) target = $region13
    $region12: #{tpu_custom_call.1} parent=1 // pred_region
      %39 = dma.done [#allocation5], 2048
    $region13: #{tpu_custom_call.1} parent=1 // pred_fallthru
      _
    // Predicated region
    $region14: #{tpu_custom_call.1} parent=1 // pred_check
      _
    $region15: #{tpu_custom_call.1} parent=1 // pred_check_branch
      %41 = sbr.rel (0) target = $region17
    $region16: #{tpu_custom_call.1} parent=1 // pred_region
      %42 = dma.done [#allocation8], 4096
    $region17: #{tpu_custom_call.1} parent=1 // pred_fallthru
      _
    %p44 = scmp.eq.s32.totalorder 0, 0
    // Predicated region
    $region18: #{tpu_custom_call.1} parent=1 // pred_check
      %p45 = pneg %p44
    $region19: #{tpu_custom_call.1} parent=1 // pred_check_branch
      %47 = sbr.rel (%p45) target = $region21
    $region20: #{tpu_custom_call.1} parent=1 // pred_region
      %48 = vst [vmem:[#allocation2] sm:$0xf] 0
      %49 = vst [vmem:[#allocation3] sm:$0xff] 0.0
    $region21: #{tpu_custom_call.1} parent=1 // pred_fallthru
      _
    %v50 = vld [vmem:[#allocation7] sm:$0xff]
    %v51 = vld [vmem:[#allocation7 + $0x8] sm:$0xff]
    %v52 = vld [vmem:[#allocation7 + $0x10] sm:$0xff]
    %v53 = vld [vmem:[#allocation7 + $0x18] sm:$0xff]
    %v54 = vld [vmem:[#allocation7 + $0x20] sm:$0xff]
    %v55 = vld [vmem:[#allocation7 + $0x28] sm:$0xff]
    %v56 = vld [vmem:[#allocation7 + $0x30] sm:$0xff]
    %v57 = vld [vmem:[#allocation7 + $0x38] sm:$0xff]
    %v58 = vld [vmem:[#allocation7 + $0x40] sm:$0xff]
    %v59 = vld [vmem:[#allocation7 + $0x48] sm:$0xff]
    %v60 = vld [vmem:[#allocation7 + $0x50] sm:$0xff]
    %v61 = vld [vmem:[#allocation7 + $0x58] sm:$0xff]
    %v62 = vld [vmem:[#allocation7 + $0x60] sm:$0xff]
    %v63 = vld [vmem:[#allocation7 + $0x68] sm:$0xff]
    %v64 = vld [vmem:[#allocation7 + $0x70] sm:$0xff]
    %v65 = vld [vmem:[#allocation7 + $0x78] sm:$0xff]
    %v66 = vld [vmem:[#allocation7 + $0x80] sm:$0xff]
    %v67 = vld [vmem:[#allocation7 + $0x88] sm:$0xff]
    %v68 = vld [vmem:[#allocation7 + $0x90] sm:$0xff]
    %v69 = vld [vmem:[#allocation7 + $0x98] sm:$0xff]
    %v70 = vld [vmem:[#allocation7 + $0xa0] sm:$0xff]
    %v71 = vld [vmem:[#allocation7 + $0xa8] sm:$0xff]
    %v72 = vld [vmem:[#allocation7 + $0xb0] sm:$0xff]
    %v73 = vld [vmem:[#allocation7 + $0xb8] sm:$0xff]
    %v74 = vld [vmem:[#allocation7 + $0xc0] sm:$0xff]
    %v75 = vld [vmem:[#allocation7 + $0xc8] sm:$0xff]
    %v76 = vld [vmem:[#allocation7 + $0xd0] sm:$0xff]
    %v77 = vld [vmem:[#allocation7 + $0xd8] sm:$0xff]
    %v78 = vld [vmem:[#allocation7 + $0xe0] sm:$0xff]
    %v79 = vld [vmem:[#allocation7 + $0xe8] sm:$0xff]
    %v80 = vld [vmem:[#allocation7 + $0xf0] sm:$0xff]
    %v81 = vld [vmem:[#allocation7 + $0xf8] sm:$0xff]
    %v82 = vld [vmem:[#allocation2] sm:$0xf]
    %v83 = vld [vmem:[#allocation3] sm:$0xff]
    %v84 = vld [vmem:[#allocation4] sm:$0xff]
    %v85 = vld [vmem:[#allocation4 + $0x8] sm:$0xff]
    %v86 = vunpack.c.l.bf16 %v84
    %v87 = vunpack.c.h.bf16 %v84
    %v88 = vunpack.c.l.bf16 %v85
    %v89 = vunpack.c.h.bf16 %v85
    %v122 = vunpack.c.l.b16 %v50
    %v123 = vunpack.c.h.b16 %v50
    %v124 = vunpack.c.l.b16 %v51
    %v125 = vunpack.c.h.b16 %v51
    %v126 = vunpack.c.l.b16 %v52
    %v127 = vunpack.c.h.b16 %v52
    %v128 = vunpack.c.l.b16 %v53
    %v129 = vunpack.c.h.b16 %v53
    %v130 = vunpack.c.l.b16 %v54
    %v131 = vunpack.c.h.b16 %v54
    %v132 = vunpack.c.l.b16 %v55
    %v133 = vunpack.c.h.b16 %v55
    %v134 = vunpack.c.l.b16 %v56
    %v135 = vunpack.c.h.b16 %v56
    %v136 = vunpack.c.l.b16 %v57
    %v137 = vunpack.c.h.b16 %v57
    %v138 = vunpack.c.l.b16 %v58
    %v139 = vunpack.c.h.b16 %v58
    %v140 = vunpack.c.l.b16 %v59
    %v141 = vunpack.c.h.b16 %v59
    %v142 = vunpack.c.l.b16 %v60
    %v143 = vunpack.c.h.b16 %v60
    %v144 = vunpack.c.l.b16 %v61
    %v145 = vunpack.c.h.b16 %v61
    %v146 = vunpack.c.l.b16 %v62
    %v147 = vunpack.c.h.b16 %v62
    %v148 = vunpack.c.l.b16 %v63
    %v149 = vunpack.c.h.b16 %v63
    %v150 = vunpack.c.l.b16 %v64
    %v151 = vunpack.c.h.b16 %v64
    %v152 = vunpack.c.l.b16 %v65
    %v153 = vunpack.c.h.b16 %v65
    %v154 = vunpack.c.l.b16 %v66
    %v155 = vunpack.c.h.b16 %v66
    %v156 = vunpack.c.l.b16 %v67
    %v157 = vunpack.c.h.b16 %v67
    %v158 = vunpack.c.l.b16 %v68
    %v159 = vunpack.c.h.b16 %v68
    %v160 = vunpack.c.l.b16 %v69
    %v161 = vunpack.c.h.b16 %v69
    %v162 = vunpack.c.l.b16 %v70
    %v163 = vunpack.c.h.b16 %v70
    %v164 = vunpack.c.l.b16 %v71
    %v165 = vunpack.c.h.b16 %v71
    %v166 = vunpack.c.l.b16 %v72
    %v167 = vunpack.c.h.b16 %v72
    %v168 = vunpack.c.l.b16 %v73
    %v169 = vunpack.c.h.b16 %v73
    %v170 = vunpack.c.l.b16 %v74
    %v171 = vunpack.c.h.b16 %v74
    %v172 = vunpack.c.l.b16 %v75
    %v173 = vunpack.c.h.b16 %v75
    %v174 = vunpack.c.l.b16 %v76
    %v175 = vunpack.c.h.b16 %v76
    %v176 = vunpack.c.l.b16 %v77
    %v177 = vunpack.c.h.b16 %v77
    %v178 = vunpack.c.l.b16 %v78
    %v179 = vunpack.c.h.b16 %v78
    %v180 = vunpack.c.l.b16 %v79
    %v181 = vunpack.c.h.b16 %v79
    %v182 = vunpack.c.l.b16 %v80
    %v183 = vunpack.c.h.b16 %v80
    %v184 = vunpack.c.l.b16 %v81
    %v185 = vunpack.c.h.b16 %v81
    %v186 = vpack.c.b16 %v126, %v122
    %v187 = vpack.c.b16 %v127, %v123
    %v188 = vpack.c.b16 %v128, %v124
    %v189 = vpack.c.b16 %v129, %v125
    %v190 = vpack.c.b16 %v134, %v130
    %v191 = vpack.c.b16 %v135, %v131
    %v192 = vpack.c.b16 %v136, %v132
    %v193 = vpack.c.b16 %v137, %v133
    %v194 = vpack.c.b16 %v142, %v138
    %v195 = vpack.c.b16 %v143, %v139
    %v196 = vpack.c.b16 %v144, %v140
    %v197 = vpack.c.b16 %v145, %v141
    %v198 = vpack.c.b16 %v150, %v146
    %v199 = vpack.c.b16 %v151, %v147
    %v200 = vpack.c.b16 %v152, %v148
    %v201 = vpack.c.b16 %v153, %v149
    %v202 = vpack.c.b16 %v158, %v154
    %v203 = vpack.c.b16 %v159, %v155
    %v204 = vpack.c.b16 %v160, %v156
    %v205 = vpack.c.b16 %v161, %v157
    %v206 = vpack.c.b16 %v166, %v162
    %v207 = vpack.c.b16 %v167, %v163
    %v208 = vpack.c.b16 %v168, %v164
    %v209 = vpack.c.b16 %v169, %v165
    %v210 = vpack.c.b16 %v174, %v170
    %v211 = vpack.c.b16 %v175, %v171
    %v212 = vpack.c.b16 %v176, %v172
    %v213 = vpack.c.b16 %v177, %v173
    %v214 = vpack.c.b16 %v182, %v178
    %v215 = vpack.c.b16 %v183, %v179
    %v216 = vpack.c.b16 %v184, %v180
    %v217 = vpack.c.b16 %v185, %v181
    %250 = vmatprep.subr.bf16.mxu0 %v187
    %251 = vmatpush1.bf16.msra.mxu0 %v186
    %252 = vmatprep.subr.bf16.mxu0 %v191
    %253 = vmatpush1.bf16.msra.mxu0 %v190
    %254 = vmatprep.subr.bf16.mxu0 %v195
    %255 = vmatpush1.bf16.msra.mxu0 %v194
    %256 = vmatprep.subr.bf16.mxu0 %v199
    %257 = vmatpush1.bf16.msra.mxu0 %v198
    %258 = vmatprep.subr.bf16.mxu0 %v203
    %259 = vmatpush1.bf16.msra.mxu0 %v202
    %260 = vmatprep.subr.bf16.mxu0 %v207
    %261 = vmatpush1.bf16.msra.mxu0 %v206
    %262 = vmatprep.subr.bf16.mxu0 %v211
    %263 = vmatpush1.bf16.msra.mxu0 %v210
    %264 = vmatprep.subr.bf16.mxu0 %v215
    %265 = vmatpush1.bf16.msra.mxu0 %v214
    %266 = vmatprep.subr.bf16.mxu0 0
    %267 = vmatpush1.bf16.msra.mxu0 0
    %268 = vmatprep.subr.bf16.mxu0 0
    %269 = vmatpush1.bf16.msra.mxu0 0
    %270 = vmatprep.subr.bf16.mxu0 0
    %271 = vmatpush1.bf16.msra.mxu0 0
    %272 = vmatprep.subr.bf16.mxu0 0
    %273 = vmatpush1.bf16.msra.mxu0 0
    %274 = vmatprep.subr.bf16.mxu0 0
    %275 = vmatpush1.bf16.msra.mxu0 0
    %276 = vmatprep.subr.bf16.mxu0 0
    %277 = vmatpush1.bf16.msra.mxu0 0
    %278 = vmatprep.subr.bf16.mxu0 0
    %279 = vmatpush1.bf16.msra.mxu0 0
    %280 = vmatprep.subr.bf16.mxu0 0
    %281 = vmatpush1.bf16.msra.mxu0 0
    %282 = vmatprep.mubr.bf16.mxu0 0
    %283 = vmatmul.mubr.bf16.gmra.mrb[0].mxu0 %v82
    %v284 = vpop.f32.mrb[0].mxu0
    %v285 = vadd.f32 0.0, %v284
    %v286 = vpop.f32.mrb[0].mxu0
    %v287 = vadd.f32 0.0, %v286
    %v288 = vpop.f32.mrb[0].mxu0
    %v289 = vpop.f32.mrb[0].mxu0
    %290 = vdwg.mxu0
    %291 = vmatprep.subr.bf16.mxu0 %v189
    %292 = vmatpush1.bf16.msra.mxu0 %v188
    %293 = vmatprep.subr.bf16.mxu0 %v193
    %294 = vmatpush1.bf16.msra.mxu0 %v192
    %295 = vmatprep.subr.bf16.mxu0 %v197
    %296 = vmatpush1.bf16.msra.mxu0 %v196
    %297 = vmatprep.subr.bf16.mxu0 %v201
    %298 = vmatpush1.bf16.msra.mxu0 %v200
    %299 = vmatprep.subr.bf16.mxu0 %v205
    %300 = vmatpush1.bf16.msra.mxu0 %v204
    %301 = vmatprep.subr.bf16.mxu0 %v209
    %302 = vmatpush1.bf16.msra.mxu0 %v208
    %303 = vmatprep.subr.bf16.mxu0 %v213
    %304 = vmatpush1.bf16.msra.mxu0 %v212
    %305 = vmatprep.subr.bf16.mxu0 %v217
    %306 = vmatpush1.bf16.msra.mxu0 %v216
    %307 = vmatprep.subr.bf16.mxu0 0
    %308 = vmatpush1.bf16.msra.mxu0 0
    %309 = vmatprep.subr.bf16.mxu0 0
    %310 = vmatpush1.bf16.msra.mxu0 0
    %311 = vmatprep.subr.bf16.mxu0 0
    %312 = vmatpush1.bf16.msra.mxu0 0
    %313 = vmatprep.subr.bf16.mxu0 0
    %314 = vmatpush1.bf16.msra.mxu0 0
    %315 = vmatprep.subr.bf16.mxu0 0
    %316 = vmatpush1.bf16.msra.mxu0 0
    %317 = vmatprep.subr.bf16.mxu0 0
    %318 = vmatpush1.bf16.msra.mxu0 0
    %319 = vmatprep.subr.bf16.mxu0 0
    %320 = vmatpush1.bf16.msra.mxu0 0
    %321 = vmatprep.subr.bf16.mxu0 0
    %322 = vmatpush1.bf16.msra.mxu0 0
    %323 = vmatprep.mubr.bf16.mxu0 0
    %324 = vmatmul.mubr.bf16.gmra.mrb[0].mxu0 %v82
    %v325 = vpop.f32.mrb[0].mxu0
    %v326 = vadd.f32 0.0, %v325
    %v327 = vpop.f32.mrb[0].mxu0
    %v328 = vadd.f32 0.0, %v327
    %v329 = vpop.f32.mrb[0].mxu0
    %v330 = vpop.f32.mrb[0].mxu0
    %331 = vdwg.mxu0
    %v332 = vadd.f32 %v86, %v285
    %v333 = vadd.f32 %v87, %v287
    %v334 = vadd.f32 %v88, %v326
    %v335 = vadd.f32 %v89, %v328
    %v336 = vxor.u32 %v332, 2147483648
    %v337 = vmul.f32 %v336, 1.442695
    %v338 = vpow.pop %v337
    %v339 = vadd.f32 %v338, 1.0
    %v340 = vrcp.pop %v339
    %v341 = vmul.f32 1.0, %v340
    %v342 = vxor.u32 %v333, 2147483648
    %v343 = vmul.f32 %v342, 1.442695
    %v344 = vpow.pop %v343
    %v345 = vadd.f32 %v344, 1.0
    %v346 = vrcp.pop %v345
    %v347 = vmul.f32 1.0, %v346
    %v348 = vtanh.pop %v334
    %v349 = vxor.u32 %v335, 2147483648
    %v350 = vmul.f32 %v349, 1.442695
    %v351 = vpow.pop %v350
    %v352 = vadd.f32 %v351, 1.0
    %v353 = vrcp.pop %v352
    %v354 = vmul.f32 1.0, %v353
    %v355 = vmul.f32 %v347, %v83
    %v356 = vmul.f32 %v341, %v348
    %v357 = vadd.f32 %v355, %v356
    %v358 = vtanh.pop %v357
    %v359 = vmul.f32 %v354, %v358
    %v360 = vpack.c.bf16 %v359, %v359
    %361 = vst [vmem:[#allocation9] sm:$0xf] %v360
    %s362 = scalar_lea.vmem [#allocation4], 16
    %v363 = vld [vmem:[%s362] sm:$0xff]
    %v364 = vld [vmem:[%s362 + $0x8] sm:$0xff]
    %v365 = vunpack.c.l.bf16 %v363
    %v366 = vunpack.c.h.bf16 %v363
    %v367 = vunpack.c.l.bf16 %v364
    %v368 = vunpack.c.h.bf16 %v364
    %369 = vmatprep.subr.bf16.mxu0 %v187
    %370 = vmatpush1.bf16.msra.mxu0 %v186
    %371 = vmatprep.subr.bf16.mxu0 %v191
    %372 = vmatpush1.bf16.msra.mxu0 %v190
    %373 = vmatprep.subr.bf16.mxu0 %v195
    %374 = vmatpush1.bf16.msra.mxu0 %v194
    %375 = vmatprep.subr.bf16.mxu0 %v199
    %376 = vmatpush1.bf16.msra.mxu0 %v198
    %377 = vmatprep.subr.bf16.mxu0 %v203
    %378 = vmatpush1.bf16.msra.mxu0 %v202
    %379 = vmatprep.subr.bf16.mxu0 %v207
    %380 = vmatpush1.bf16.msra.mxu0 %v206
    %381 = vmatprep.subr.bf16.mxu0 %v211
    %382 = vmatpush1.bf16.msra.mxu0 %v210
    %383 = vmatprep.subr.bf16.mxu0 %v215
    %384 = vmatpush1.bf16.msra.mxu0 %v214
    %385 = vmatprep.subr.bf16.mxu0 0
    %386 = vmatpush1.bf16.msra.mxu0 0
    %387 = vmatprep.subr.bf16.mxu0 0
    %388 = vmatpush1.bf16.msra.mxu0 0
    %389 = vmatprep.subr.bf16.mxu0 0
    %390 = vmatpush1.bf16.msra.mxu0 0
    %391 = vmatprep.subr.bf16.mxu0 0
    %392 = vmatpush1.bf16.msra.mxu0 0
    %393 = vmatprep.subr.bf16.mxu0 0
    %394 = vmatpush1.bf16.msra.mxu0 0
    %395 = vmatprep.subr.bf16.mxu0 0
    %396 = vmatpush1.bf16.msra.mxu0 0
    %397 = vmatprep.subr.bf16.mxu0 0
    %398 = vmatpush1.bf16.msra.mxu0 0
    %399 = vmatprep.subr.bf16.mxu0 0
    %400 = vmatpush1.bf16.msra.mxu0 0
    %401 = vmatprep.mubr.bf16.mxu0 0
    %402 = vmatmul.mubr.bf16.gmra.mrb[0].mxu0 %v360
    %v403 = vpop.f32.mrb[0].mxu0
    %v404 = vadd.f32 0.0, %v403
    %v405 = vpop.f32.mrb[0].mxu0
    %v406 = vadd.f32 0.0, %v405
    %v407 = vpop.f32.mrb[0].mxu0
    %v408 = vpop.f32.mrb[0].mxu0
    %409 = vdwg.mxu0
    %410 = vmatprep.subr.bf16.mxu0 %v189
    %411 = vmatpush1.bf16.msra.mxu0 %v188
    %412 = vmatprep.subr.bf16.mxu0 %v193
    %413 = vmatpush1.bf16.msra.mxu0 %v192
    %414 = vmatprep.subr.bf16.mxu0 %v197
    %415 = vmatpush1.bf16.msra.mxu0 %v196
    %416 = vmatprep.subr.bf16.mxu0 %v201
    %417 = vmatpush1.bf16.msra.mxu0 %v200
    %418 = vmatprep.subr.bf16.mxu0 %v205
    %419 = vmatpush1.bf16.msra.mxu0 %v204
    %420 = vmatprep.subr.bf16.mxu0 %v209
    %421 = vmatpush1.bf16.msra.mxu0 %v208
    %422 = vmatprep.subr.bf16.mxu0 %v213
    %423 = vmatpush1.bf16.msra.mxu0 %v212
    %424 = vmatprep.subr.bf16.mxu0 %v217
    %425 = vmatpush1.bf16.msra.mxu0 %v216
    %426 = vmatprep.subr.bf16.mxu0 0
    %427 = vmatpush1.bf16.msra.mxu0 0
    %428 = vmatprep.subr.bf16.mxu0 0
    %429 = vmatpush1.bf16.msra.mxu0 0
    %430 = vmatprep.subr.bf16.mxu0 0
    %431 = vmatpush1.bf16.msra.mxu0 0
    %432 = vmatprep.subr.bf16.mxu0 0
    %433 = vmatpush1.bf16.msra.mxu0 0
    %434 = vmatprep.subr.bf16.mxu0 0
    %435 = vmatpush1.bf16.msra.mxu0 0
    %436 = vmatprep.subr.bf16.mxu0 0
    %437 = vmatpush1.bf16.msra.mxu0 0
    %438 = vmatprep.subr.bf16.mxu0 0
    %439 = vmatpush1.bf16.msra.mxu0 0
    %440 = vmatprep.subr.bf16.mxu0 0
    %441 = vmatpush1.bf16.msra.mxu0 0
    %442 = vmatprep.mubr.bf16.mxu0 0
    %443 = vmatmul.mubr.bf16.gmra.mrb[0].mxu0 %v360
    %v444 = vpop.f32.mrb[0].mxu0
    %v445 = vadd.f32 0.0, %v444
    %v446 = vpop.f32.mrb[0].mxu0
    %v447 = vadd.f32 0.0, %v446
    %v448 = vpop.f32.mrb[0].mxu0
    %v449 = vpop.f32.mrb[0].mxu0
    %450 = vdwg.mxu0
    %v451 = vadd.f32 %v365, %v404
    %v452 = vadd.f32 %v366, %v406
    %v453 = vadd.f32 %v367, %v445
    %v454 = vadd.f32 %v368, %v447
    %v455 = vxor.u32 %v451, 2147483648
    %v456 = vmul.f32 %v455, 1.442695
    %v457 = vpow.pop %v456
    %v458 = vadd.f32 %v457, 1.0
    %v459 = vrcp.pop %v458
    %v460 = vmul.f32 1.0, %v459
    %v461 = vxor.u32 %v452, 2147483648
    %v462 = vmul.f32 %v461, 1.442695
    %v463 = vpow.pop %v462
    %v464 = vadd.f32 %v463, 1.0
    %v465 = vrcp.pop %v464
    %v466 = vmul.f32 1.0, %v465
    %v467 = vtanh.pop %v453
    %v468 = vxor.u32 %v454, 2147483648
    %v469 = vmul.f32 %v468, 1.442695
    %v470 = vpow.pop %v469
    %v471 = vadd.f32 %v470, 1.0
    %v472 = vrcp.pop %v471
    %v473 = vmul.f32 1.0, %v472
    %v474 = vmul.f32 %v466, %v357
    %v475 = vmul.f32 %v460, %v467
    %v476 = vadd.f32 %v474, %v475
    %v477 = vtanh.pop %v476
    %v478 = vmul.f32 %v473, %v477
    %v479 = vpack.c.bf16 %v478, %v478
    %s480 = scalar_lea.vmem [#allocation9], 4
    %481 = vst [vmem:[%s480] sm:$0xf] %v479
    %s482 = scalar_lea.vmem [#allocation4], 32
    %v483 = vld [vmem:[%s482] sm:$0xff]
    %v484 = vld [vmem:[%s482 + $0x8] sm:$0xff]
    %v485 = vunpack.c.l.bf16 %v483
    %v486 = vunpack.c.h.bf16 %v483
    %v487 = vunpack.c.l.bf16 %v484
    %v488 = vunpack.c.h.bf16 %v484
    %489 = vmatprep.subr.bf16.mxu0 %v187
    %490 = vmatpush1.bf16.msra.mxu0 %v186
    %491 = vmatprep.subr.bf16.mxu0 %v191
    %492 = vmatpush1.bf16.msra.mxu0 %v190
    %493 = vmatprep.subr.bf16.mxu0 %v195
    %494 = vmatpush1.bf16.msra.mxu0 %v194
    %495 = vmatprep.subr.bf16.mxu0 %v199
    %496 = vmatpush1.bf16.msra.mxu0 %v198
    %497 = vmatprep.subr.bf16.mxu0 %v203
    %498 = vmatpush1.bf16.msra.mxu0 %v202
    %499 = vmatprep.subr.bf16.mxu0 %v207
    %500 = vmatpush1.bf16.msra.mxu0 %v206
    %501 = vmatprep.subr.bf16.mxu0 %v211
    %502 = vmatpush1.bf16.msra.mxu0 %v210
    %503 = vmatprep.subr.bf16.mxu0 %v215
    %504 = vmatpush1.bf16.msra.mxu0 %v214
    %505 = vmatprep.subr.bf16.mxu0 0
    %506 = vmatpush1.bf16.msra.mxu0 0
    %507 = vmatprep.subr.bf16.mxu0 0
    %508 = vmatpush1.bf16.msra.mxu0 0
    %509 = vmatprep.subr.bf16.mxu0 0
    %510 = vmatpush1.bf16.msra.mxu0 0
    %511 = vmatprep.subr.bf16.mxu0 0
    %512 = vmatpush1.bf16.msra.mxu0 0
    %513 = vmatprep.subr.bf16.mxu0 0
    %514 = vmatpush1.bf16.msra.mxu0 0
    %515 = vmatprep.subr.bf16.mxu0 0
    %516 = vmatpush1.bf16.msra.mxu0 0
    %517 = vmatprep.subr.bf16.mxu0 0
    %518 = vmatpush1.bf16.msra.mxu0 0
    %519 = vmatprep.subr.bf16.mxu0 0
    %520 = vmatpush1.bf16.msra.mxu0 0
    %521 = vmatprep.mubr.bf16.mxu0 0
    %522 = vmatmul.mubr.bf16.gmra.mrb[0].mxu0 %v479
    %v523 = vpop.f32.mrb[0].mxu0
    %v524 = vadd.f32 0.0, %v523
    %v525 = vpop.f32.mrb[0].mxu0
    %v526 = vadd.f32 0.0, %v525
    %v527 = vpop.f32.mrb[0].mxu0
    %v528 = vpop.f32.mrb[0].mxu0
    %529 = vdwg.mxu0
    %530 = vmatprep.subr.bf16.mxu0 %v189
    %531 = vmatpush1.bf16.msra.mxu0 %v188
    %532 = vmatprep.subr.bf16.mxu0 %v193
    %533 = vmatpush1.bf16.msra.mxu0 %v192
    %534 = vmatprep.subr.bf16.mxu0 %v197
    %535 = vmatpush1.bf16.msra.mxu0 %v196
    %536 = vmatprep.subr.bf16.mxu0 %v201
    %537 = vmatpush1.bf16.msra.mxu0 %v200
    %538 = vmatprep.subr.bf16.mxu0 %v205
    %539 = vmatpush1.bf16.msra.mxu0 %v204
    %540 = vmatprep.subr.bf16.mxu0 %v209
    %541 = vmatpush1.bf16.msra.mxu0 %v208
    %542 = vmatprep.subr.bf16.mxu0 %v213
    %543 = vmatpush1.bf16.msra.mxu0 %v212
    %544 = vmatprep.subr.bf16.mxu0 %v217
    %545 = vmatpush1.bf16.msra.mxu0 %v216
    %546 = vmatprep.subr.bf16.mxu0 0
    %547 = vmatpush1.bf16.msra.mxu0 0
    %548 = vmatprep.subr.bf16.mxu0 0
    %549 = vmatpush1.bf16.msra.mxu0 0
    %550 = vmatprep.subr.bf16.mxu0 0
    %551 = vmatpush1.bf16.msra.mxu0 0
    %552 = vmatprep.subr.bf16.mxu0 0
    %553 = vmatpush1.bf16.msra.mxu0 0
    %554 = vmatprep.subr.bf16.mxu0 0
    %555 = vmatpush1.bf16.msra.mxu0 0
    %556 = vmatprep.subr.bf16.mxu0 0
    %557 = vmatpush1.bf16.msra.mxu0 0
    %558 = vmatprep.subr.bf16.mxu0 0
    %559 = vmatpush1.bf16.msra.mxu0 0
    %560 = vmatprep.subr.bf16.mxu0 0
    %561 = vmatpush1.bf16.msra.mxu0 0
    %562 = vmatprep.mubr.bf16.mxu0 0
    %563 = vmatmul.mubr.bf16.gmra.mrb[0].mxu0 %v479
    %v564 = vpop.f32.mrb[0].mxu0
    %v565 = vadd.f32 0.0, %v564
    %v566 = vpop.f32.mrb[0].mxu0
    %v567 = vadd.f32 0.0, %v566
    %v568 = vpop.f32.mrb[0].mxu0
    %v569 = vpop.f32.mrb[0].mxu0
    %570 = vdwg.mxu0
    %v571 = vadd.f32 %v485, %v524
    %v572 = vadd.f32 %v486, %v526
    %v573 = vadd.f32 %v487, %v565
    %v574 = vadd.f32 %v488, %v567
    %v575 = vxor.u32 %v571, 2147483648
    %v576 = vmul.f32 %v575, 1.442695
    %v577 = vpow.pop %v576
    %v578 = vadd.f32 %v577, 1.0
    %v579 = vrcp.pop %v578
    %v580 = vmul.f32 1.0, %v579
    %v581 = vxor.u32 %v572, 2147483648
    %v582 = vmul.f32 %v581, 1.442695
    %v583 = vpow.pop %v582
    %v584 = vadd.f32 %v583, 1.0
    %v585 = vrcp.pop %v584
    %v586 = vmul.f32 1.0, %v585
    %v587 = vtanh.pop %v573
    %v588 = vxor.u32 %v574, 2147483648
    %v589 = vmul.f32 %v588, 1.442695
    %v590 = vpow.pop %v589
    %v591 = vadd.f32 %v590, 1.0
    %v592 = vrcp.pop %v591
    %v593 = vmul.f32 1.0, %v592
    %v594 = vmul.f32 %v586, %v476
    %v595 = vmul.f32 %v580, %v587
    %v596 = vadd.f32 %v594, %v595
    %v597 = vtanh.pop %v596
    %v598 = vmul.f32 %v593, %v597
    %v599 = vpack.c.bf16 %v598, %v598
    %s600 = scalar_lea.vmem [#allocation9], 8
    %601 = vst [vmem:[%s600] sm:$0xf] %v599
    %s602 = scalar_lea.vmem [#allocation4], 48
    %v603 = vld [vmem:[%s602] sm:$0xff]
    %v604 = vld [vmem:[%s602 + $0x8] sm:$0xff]
    %v605 = vunpack.c.l.bf16 %v603
    %v606 = vunpack.c.h.bf16 %v603
    %v607 = vunpack.c.l.bf16 %v604
    %v608 = vunpack.c.h.bf16 %v604
    %609 = vmatprep.subr.bf16.mxu0 %v187
    %610 = vmatpush1.bf16.msra.mxu0 %v186
    %611 = vmatprep.subr.bf16.mxu0 %v191
    %612 = vmatpush1.bf16.msra.mxu0 %v190
    %613 = vmatprep.subr.bf16.mxu0 %v195
    %614 = vmatpush1.bf16.msra.mxu0 %v194
    %615 = vmatprep.subr.bf16.mxu0 %v199
    %616 = vmatpush1.bf16.msra.mxu0 %v198
    %617 = vmatprep.subr.bf16.mxu0 %v203
    %618 = vmatpush1.bf16.msra.mxu0 %v202
    %619 = vmatprep.subr.bf16.mxu0 %v207
    %620 = vmatpush1.bf16.msra.mxu0 %v206
    %621 = vmatprep.subr.bf16.mxu0 %v211
    %622 = vmatpush1.bf16.msra.mxu0 %v210
    %623 = vmatprep.subr.bf16.mxu0 %v215
    %624 = vmatpush1.bf16.msra.mxu0 %v214
    %625 = vmatprep.subr.bf16.mxu0 0
    %626 = vmatpush1.bf16.msra.mxu0 0
    %627 = vmatprep.subr.bf16.mxu0 0
    %628 = vmatpush1.bf16.msra.mxu0 0
    %629 = vmatprep.subr.bf16.mxu0 0
    %630 = vmatpush1.bf16.msra.mxu0 0
    %631 = vmatprep.subr.bf16.mxu0 0
    %632 = vmatpush1.bf16.msra.mxu0 0
    %633 = vmatprep.subr.bf16.mxu0 0
    %634 = vmatpush1.bf16.msra.mxu0 0
    %635 = vmatprep.subr.bf16.mxu0 0
    %636 = vmatpush1.bf16.msra.mxu0 0
    %637 = vmatprep.subr.bf16.mxu0 0
    %638 = vmatpush1.bf16.msra.mxu0 0
    %639 = vmatprep.subr.bf16.mxu0 0
    %640 = vmatpush1.bf16.msra.mxu0 0
    %641 = vmatprep.mubr.bf16.mxu0 0
    %642 = vmatmul.mubr.bf16.gmra.mrb[0].mxu0 %v599
    %v643 = vpop.f32.mrb[0].mxu0
    %v644 = vadd.f32 0.0, %v643
    %v645 = vpop.f32.mrb[0].mxu0
    %v646 = vadd.f32 0.0, %v645
    %v647 = vpop.f32.mrb[0].mxu0
    %v648 = vpop.f32.mrb[0].mxu0
    %649 = vdwg.mxu0
    %650 = vmatprep.subr.bf16.mxu0 %v189
    %651 = vmatpush1.bf16.msra.mxu0 %v188
    %652 = vmatprep.subr.bf16.mxu0 %v193
    %653 = vmatpush1.bf16.msra.mxu0 %v192
    %654 = vmatprep.subr.bf16.mxu0 %v197
    %655 = vmatpush1.bf16.msra.mxu0 %v196
    %656 = vmatprep.subr.bf16.mxu0 %v201
    %657 = vmatpush1.bf16.msra.mxu0 %v200
    %658 = vmatprep.subr.bf16.mxu0 %v205
    %659 = vmatpush1.bf16.msra.mxu0 %v204
    %660 = vmatprep.subr.bf16.mxu0 %v209
    %661 = vmatpush1.bf16.msra.mxu0 %v208
    %662 = vmatprep.subr.bf16.mxu0 %v213
    %663 = vmatpush1.bf16.msra.mxu0 %v212
    %664 = vmatprep.subr.bf16.mxu0 %v217
    %665 = vmatpush1.bf16.msra.mxu0 %v216
    %666 = vmatprep.subr.bf16.mxu0 0
    %667 = vmatpush1.bf16.msra.mxu0 0
    %668 = vmatprep.subr.bf16.mxu0 0
    %669 = vmatpush1.bf16.msra.mxu0 0
    %670 = vmatprep.subr.bf16.mxu0 0
    %671 = vmatpush1.bf16.msra.mxu0 0
    %672 = vmatprep.subr.bf16.mxu0 0
    %673 = vmatpush1.bf16.msra.mxu0 0
    %674 = vmatprep.subr.bf16.mxu0 0
    %675 = vmatpush1.bf16.msra.mxu0 0
    %676 = vmatprep.subr.bf16.mxu0 0
    %677 = vmatpush1.bf16.msra.mxu0 0
    %678 = vmatprep.subr.bf16.mxu0 0
    %679 = vmatpush1.bf16.msra.mxu0 0
    %680 = vmatprep.subr.bf16.mxu0 0
    %681 = vmatpush1.bf16.msra.mxu0 0
    %682 = vmatprep.mubr.bf16.mxu0 0
    %683 = vmatmul.mubr.bf16.gmra.mrb[0].mxu0 %v599
    %v684 = vpop.f32.mrb[0].mxu0
    %v685 = vadd.f32 0.0, %v684
    %v686 = vpop.f32.mrb[0].mxu0
    %v687 = vadd.f32 0.0, %v686
    %v688 = vpop.f32.mrb[0].mxu0
    %v689 = vpop.f32.mrb[0].mxu0
    %690 = vdwg.mxu0
    %v691 = vadd.f32 %v605, %v644
    %v692 = vadd.f32 %v606, %v646
    %v693 = vadd.f32 %v607, %v685
    %v694 = vadd.f32 %v608, %v687
    %v695 = vxor.u32 %v691, 2147483648
    %v696 = vmul.f32 %v695, 1.442695
    %v697 = vpow.pop %v696
    %v698 = vadd.f32 %v697, 1.0
    %v699 = vrcp.pop %v698
    %v700 = vmul.f32 1.0, %v699
    %v701 = vxor.u32 %v692, 2147483648
    %v702 = vmul.f32 %v701, 1.442695
    %v703 = vpow.pop %v702
    %v704 = vadd.f32 %v703, 1.0
    %v705 = vrcp.pop %v704
    %v706 = vmul.f32 1.0, %v705
    %v707 = vtanh.pop %v693
    %v708 = vxor.u32 %v694, 2147483648
    %v709 = vmul.f32 %v708, 1.442695
    %v710 = vpow.pop %v709
    %v711 = vadd.f32 %v710, 1.0
    %v712 = vrcp.pop %v711
    %v713 = vmul.f32 1.0, %v712
    %v714 = vmul.f32 %v706, %v596
    %v715 = vmul.f32 %v700, %v707
    %v716 = vadd.f32 %v714, %v715
    %v717 = vtanh.pop %v716
    %v718 = vmul.f32 %v713, %v717
    %v719 = vpack.c.bf16 %v718, %v718
    %s720 = scalar_lea.vmem [#allocation9], 12
    %721 = vst [vmem:[%s720] sm:$0xf] %v719
    %s722 = scalar_lea.vmem [#allocation4], 64
    %v723 = vld [vmem:[%s722] sm:$0xff]
    %v724 = vld [vmem:[%s722 + $0x8] sm:$0xff]
    %v725 = vunpack.c.l.bf16 %v723
    %v726 = vunpack.c.h.bf16 %v723
    %v727 = vunpack.c.l.bf16 %v724
    %v728 = vunpack.c.h.bf16 %v724
    %729 = vmatprep.subr.bf16.mxu0 %v187
    %730 = vmatpush1.bf16.msra.mxu0 %v186
    %731 = vmatprep.subr.bf16.mxu0 %v191
    %732 = vmatpush1.bf16.msra.mxu0 %v190
    %733 = vmatprep.subr.bf16.mxu0 %v195
    %734 = vmatpush1.bf16.msra.mxu0 %v194
    %735 = vmatprep.subr.bf16.mxu0 %v199
    %736 = vmatpush1.bf16.msra.mxu0 %v198
    %737 = vmatprep.subr.bf16.mxu0 %v203
    %738 = vmatpush1.bf16.msra.mxu0 %v202
    %739 = vmatprep.subr.bf16.mxu0 %v207
    %740 = vmatpush1.bf16.msra.mxu0 %v206
    %741 = vmatprep.subr.bf16.mxu0 %v211
    %742 = vmatpush1.bf16.msra.mxu0 %v210
    %743 = vmatprep.subr.bf16.mxu0 %v215
    %744 = vmatpush1.bf16.msra.mxu0 %v214
    %745 = vmatprep.subr.bf16.mxu0 0
    %746 = vmatpush1.bf16.msra.mxu0 0
    %747 = vmatprep.subr.bf16.mxu0 0
    %748 = vmatpush1.bf16.msra.mxu0 0
    %749 = vmatprep.subr.bf16.mxu0 0
    %750 = vmatpush1.bf16.msra.mxu0 0
    %751 = vmatprep.subr.bf16.mxu0 0
    %752 = vmatpush1.bf16.msra.mxu0 0
    %753 = vmatprep.subr.bf16.mxu0 0
    %754 = vmatpush1.bf16.msra.mxu0 0
    %755 = vmatprep.subr.bf16.mxu0 0
    %756 = vmatpush1.bf16.msra.mxu0 0
    %757 = vmatprep.subr.bf16.mxu0 0
    %758 = vmatpush1.bf16.msra.mxu0 0
    %759 = vmatprep.subr.bf16.mxu0 0
    %760 = vmatpush1.bf16.msra.mxu0 0
    %761 = vmatprep.mubr.bf16.mxu0 0
    %762 = vmatmul.mubr.bf16.gmra.mrb[0].mxu0 %v719
    %v763 = vpop.f32.mrb[0].mxu0
    %v764 = vadd.f32 0.0, %v763
    %v765 = vpop.f32.mrb[0].mxu0
    %v766 = vadd.f32 0.0, %v765
    %v767 = vpop.f32.mrb[0].mxu0
    %v768 = vpop.f32.mrb[0].mxu0
    %769 = vdwg.mxu0
    %770 = vmatprep.subr.bf16.mxu0 %v189
    %771 = vmatpush1.bf16.msra.mxu0 %v188
    %772 = vmatprep.subr.bf16.mxu0 %v193
    %773 = vmatpush1.bf16.msra.mxu0 %v192
    %774 = vmatprep.subr.bf16.mxu0 %v197
    %775 = vmatpush1.bf16.msra.mxu0 %v196
    %776 = vmatprep.subr.bf16.mxu0 %v201
    %777 = vmatpush1.bf16.msra.mxu0 %v200
    %778 = vmatprep.subr.bf16.mxu0 %v205
    %779 = vmatpush1.bf16.msra.mxu0 %v204
    %780 = vmatprep.subr.bf16.mxu0 %v209
    %781 = vmatpush1.bf16.msra.mxu0 %v208
    %782 = vmatprep.subr.bf16.mxu0 %v213
    %783 = vmatpush1.bf16.msra.mxu0 %v212
    %784 = vmatprep.subr.bf16.mxu0 %v217
    %785 = vmatpush1.bf16.msra.mxu0 %v216
    %786 = vmatprep.subr.bf16.mxu0 0
    %787 = vmatpush1.bf16.msra.mxu0 0
    %788 = vmatprep.subr.bf16.mxu0 0
    %789 = vmatpush1.bf16.msra.mxu0 0
    %790 = vmatprep.subr.bf16.mxu0 0
    %791 = vmatpush1.bf16.msra.mxu0 0
    %792 = vmatprep.subr.bf16.mxu0 0
    %793 = vmatpush1.bf16.msra.mxu0 0
    %794 = vmatprep.subr.bf16.mxu0 0
    %795 = vmatpush1.bf16.msra.mxu0 0
    %796 = vmatprep.subr.bf16.mxu0 0
    %797 = vmatpush1.bf16.msra.mxu0 0
    %798 = vmatprep.subr.bf16.mxu0 0
    %799 = vmatpush1.bf16.msra.mxu0 0
    %800 = vmatprep.subr.bf16.mxu0 0
    %801 = vmatpush1.bf16.msra.mxu0 0
    %802 = vmatprep.mubr.bf16.mxu0 0
    %803 = vmatmul.mubr.bf16.gmra.mrb[0].mxu0 %v719
    %v804 = vpop.f32.mrb[0].mxu0
    %v805 = vadd.f32 0.0, %v804
    %v806 = vpop.f32.mrb[0].mxu0
    %v807 = vadd.f32 0.0, %v806
    %v808 = vpop.f32.mrb[0].mxu0
    %v809 = vpop.f32.mrb[0].mxu0
    %810 = vdwg.mxu0
    %v811 = vadd.f32 %v725, %v764
    %v812 = vadd.f32 %v726, %v766
    %v813 = vadd.f32 %v727, %v805
    %v814 = vadd.f32 %v728, %v807
    %v815 = vxor.u32 %v811, 2147483648
    %v816 = vmul.f32 %v815, 1.442695
    %v817 = vpow.pop %v816
    %v818 = vadd.f32 %v817, 1.0
    %v819 = vrcp.pop %v818
    %v820 = vmul.f32 1.0, %v819
    %v821 = vxor.u32 %v812, 2147483648
    %v822 = vmul.f32 %v821, 1.442695
    %v823 = vpow.pop %v822
    %v824 = vadd.f32 %v823, 1.0
    %v825 = vrcp.pop %v824
    %v826 = vmul.f32 1.0, %v825
    %v827 = vtanh.pop %v813
    %v828 = vxor.u32 %v814, 2147483648
    %v829 = vmul.f32 %v828, 1.442695
    %v830 = vpow.pop %v829
    %v831 = vadd.f32 %v830, 1.0
    %v832 = vrcp.pop %v831
    %v833 = vmul.f32 1.0, %v832
    %v834 = vmul.f32 %v826, %v716
    %v835 = vmul.f32 %v820, %v827
    %v836 = vadd.f32 %v834, %v835
    %v837 = vtanh.pop %v836
    %v838 = vmul.f32 %v833, %v837
    %v839 = vpack.c.bf16 %v838, %v838
    %s840 = scalar_lea.vmem [#allocation9], 16
    %841 = vst [vmem:[%s840] sm:$0xf] %v839
    %s842 = scalar_lea.vmem [#allocation4], 80
    %v843 = vld [vmem:[%s842] sm:$0xff]
    %v844 = vld [vmem:[%s842 + $0x8] sm:$0xff]
    %v845 = vunpack.c.l.bf16 %v843
    %v846 = vunpack.c.h.bf16 %v843
    %v847 = vunpack.c.l.bf16 %v844
    %v848 = vunpack.c.h.bf16 %v844
    %849 = vmatprep.subr.bf16.mxu0 %v187
    %850 = vmatpush1.bf16.msra.mxu0 %v186
    %851 = vmatprep.subr.bf16.mxu0 %v191
    %852 = vmatpush1.bf16.msra.mxu0 %v190
    %853 = vmatprep.subr.bf16.mxu0 %v195
    %854 = vmatpush1.bf16.msra.mxu0 %v194
    %855 = vmatprep.subr.bf16.mxu0 %v199
    %856 = vmatpush1.bf16.msra.mxu0 %v198
    %857 = vmatprep.subr.bf16.mxu0 %v203
    %858 = vmatpush1.bf16.msra.mxu0 %v202
    %859 = vmatprep.subr.bf16.mxu0 %v207
    %860 = vmatpush1.bf16.msra.mxu0 %v206
    %861 = vmatprep.subr.bf16.mxu0 %v211
    %862 = vmatpush1.bf16.msra.mxu0 %v210
    %863 = vmatprep.subr.bf16.mxu0 %v215
    %864 = vmatpush1.bf16.msra.mxu0 %v214
    %865 = vmatprep.subr.bf16.mxu0 0
    %866 = vmatpush1.bf16.msra.mxu0 0
    %867 = vmatprep.subr.bf16.mxu0 0
    %868 = vmatpush1.bf16.msra.mxu0 0
    %869 = vmatprep.subr.bf16.mxu0 0
    %870 = vmatpush1.bf16.msra.mxu0 0
    %871 = vmatprep.subr.bf16.mxu0 0
    %872 = vmatpush1.bf16.msra.mxu0 0
    %873 = vmatprep.subr.bf16.mxu0 0
    %874 = vmatpush1.bf16.msra.mxu0 0
    %875 = vmatprep.subr.bf16.mxu0 0
    %876 = vmatpush1.bf16.msra.mxu0 0
    %877 = vmatprep.subr.bf16.mxu0 0
    %878 = vmatpush1.bf16.msra.mxu0 0
    %879 = vmatprep.subr.bf16.mxu0 0
    %880 = vmatpush1.bf16.msra.mxu0 0
    %881 = vmatprep.mubr.bf16.mxu0 0
    %882 = vmatmul.mubr.bf16.gmra.mrb[0].mxu0 %v839
    %v883 = vpop.f32.mrb[0].mxu0
    %v884 = vadd.f32 0.0, %v883
    %v885 = vpop.f32.mrb[0].mxu0
    %v886 = vadd.f32 0.0, %v885
    %v887 = vpop.f32.mrb[0].mxu0
    %v888 = vpop.f32.mrb[0].mxu0
    %889 = vdwg.mxu0
    %890 = vmatprep.subr.bf16.mxu0 %v189
    %891 = vmatpush1.bf16.msra.mxu0 %v188
    %892 = vmatprep.subr.bf16.mxu0 %v193
    %893 = vmatpush1.bf16.msra.mxu0 %v192
    %894 = vmatprep.subr.bf16.mxu0 %v197
    %895 = vmatpush1.bf16.msra.mxu0 %v196
    %896 = vmatprep.subr.bf16.mxu0 %v201
    %897 = vmatpush1.bf16.msra.mxu0 %v200
    %898 = vmatprep.subr.bf16.mxu0 %v205
    %899 = vmatpush1.bf16.msra.mxu0 %v204
    %900 = vmatprep.subr.bf16.mxu0 %v209
    %901 = vmatpush1.bf16.msra.mxu0 %v208
    %902 = vmatprep.subr.bf16.mxu0 %v213
    %903 = vmatpush1.bf16.msra.mxu0 %v212
    %904 = vmatprep.subr.bf16.mxu0 %v217
    %905 = vmatpush1.bf16.msra.mxu0 %v216
    %906 = vmatprep.subr.bf16.mxu0 0
    %907 = vmatpush1.bf16.msra.mxu0 0
    %908 = vmatprep.subr.bf16.mxu0 0
    %909 = vmatpush1.bf16.msra.mxu0 0
    %910 = vmatprep.subr.bf16.mxu0 0
    %911 = vmatpush1.bf16.msra.mxu0 0
    %912 = vmatprep.subr.bf16.mxu0 0
    %913 = vmatpush1.bf16.msra.mxu0 0
    %914 = vmatprep.subr.bf16.mxu0 0
    %915 = vmatpush1.bf16.msra.mxu0 0
    %916 = vmatprep.subr.bf16.mxu0 0
    %917 = vmatpush1.bf16.msra.mxu0 0
    %918 = vmatprep.subr.bf16.mxu0 0
    %919 = vmatpush1.bf16.msra.mxu0 0
    %920 = vmatprep.subr.bf16.mxu0 0
    %921 = vmatpush1.bf16.msra.mxu0 0
    %922 = vmatprep.mubr.bf16.mxu0 0
    %923 = vmatmul.mubr.bf16.gmra.mrb[0].mxu0 %v839
    %v924 = vpop.f32.mrb[0].mxu0
    %v925 = vadd.f32 0.0, %v924
    %v926 = vpop.f32.mrb[0].mxu0
    %v927 = vadd.f32 0.0, %v926
    %v928 = vpop.f32.mrb[0].mxu0
    %v929 = vpop.f32.mrb[0].mxu0
    %930 = vdwg.mxu0
    %v931 = vadd.f32 %v845, %v884
    %v932 = vadd.f32 %v846, %v886
    %v933 = vadd.f32 %v847, %v925
    %v934 = vadd.f32 %v848, %v927
    %v935 = vxor.u32 %v931, 2147483648
    %v936 = vmul.f32 %v935, 1.442695
    %v937 = vpow.pop %v936
    %v938 = vadd.f32 %v937, 1.0
    %v939 = vrcp.pop %v938
    %v940 = vmul.f32 1.0, %v939
    %v941 = vxor.u32 %v932, 2147483648
    %v942 = vmul.f32 %v941, 1.442695
    %v943 = vpow.pop %v942
    %v944 = vadd.f32 %v943, 1.0
    %v945 = vrcp.pop %v944
    %v946 = vmul.f32 1.0, %v945
    %v947 = vtanh.pop %v933
    %v948 = vxor.u32 %v934, 2147483648
    %v949 = vmul.f32 %v948, 1.442695
    %v950 = vpow.pop %v949
    %v951 = vadd.f32 %v950, 1.0
    %v952 = vrcp.pop %v951
    %v953 = vmul.f32 1.0, %v952
    %v954 = vmul.f32 %v946, %v836
    %v955 = vmul.f32 %v940, %v947
    %v956 = vadd.f32 %v954, %v955
    %v957 = vtanh.pop %v956
    %v958 = vmul.f32 %v953, %v957
    %v959 = vpack.c.bf16 %v958, %v958
    %s960 = scalar_lea.vmem [#allocation9], 20
    %961 = vst [vmem:[%s960] sm:$0xf] %v959
    %s962 = scalar_lea.vmem [#allocation4], 96
    %v963 = vld [vmem:[%s962] sm:$0xff]
    %v964 = vld [vmem:[%s962 + $0x8] sm:$0xff]
    %v965 = vunpack.c.l.bf16 %v963
    %v966 = vunpack.c.h.bf16 %v963
    %v967 = vunpack.c.l.bf16 %v964
    %v968 = vunpack.c.h.bf16 %v964
    %969 = vmatprep.subr.bf16.mxu0 %v187
    %970 = vmatpush1.bf16.msra.mxu0 %v186
    %971 = vmatprep.subr.bf16.mxu0 %v191
    %972 = vmatpush1.bf16.msra.mxu0 %v190
    %973 = vmatprep.subr.bf16.mxu0 %v195
    %974 = vmatpush1.bf16.msra.mxu0 %v194
    %975 = vmatprep.subr.bf16.mxu0 %v199
    %976 = vmatpush1.bf16.msra.mxu0 %v198
    %977 = vmatprep.subr.bf16.mxu0 %v203
    %978 = vmatpush1.bf16.msra.mxu0 %v202
    %979 = vmatprep.subr.bf16.mxu0 %v207
    %980 = vmatpush1.bf16.msra.mxu0 %v206
    %981 = vmatprep.subr.bf16.mxu0 %v211
    %982 = vmatpush1.bf16.msra.mxu0 %v210
    %983 = vmatprep.subr.bf16.mxu0 %v215
    %984 = vmatpush1.bf16.msra.mxu0 %v214
    %985 = vmatprep.subr.bf16.mxu0 0
    %986 = vmatpush1.bf16.msra.mxu0 0
    %987 = vmatprep.subr.bf16.mxu0 0
    %988 = vmatpush1.bf16.msra.mxu0 0
    %989 = vmatprep.subr.bf16.mxu0 0
    %990 = vmatpush1.bf16.msra.mxu0 0
    %991 = vmatprep.subr.bf16.mxu0 0
    %992 = vmatpush1.bf16.msra.mxu0 0
    %993 = vmatprep.subr.bf16.mxu0 0
    %994 = vmatpush1.bf16.msra.mxu0 0
    %995 = vmatprep.subr.bf16.mxu0 0
    %996 = vmatpush1.bf16.msra.mxu0 0
    %997 = vmatprep.subr.bf16.mxu0 0
    %998 = vmatpush1.bf16.msra.mxu0 0
    %999 = vmatprep.subr.bf16.mxu0 0
    %1000 = vmatpush1.bf16.msra.mxu0 0
    %1001 = vmatprep.mubr.bf16.mxu0 0
    %1002 = vmatmul.mubr.bf16.gmra.mrb[0].mxu0 %v959
    %v1003 = vpop.f32.mrb[0].mxu0
    %v1004 = vadd.f32 0.0, %v1003
    %v1005 = vpop.f32.mrb[0].mxu0
    %v1006 = vadd.f32 0.0, %v1005
    %v1007 = vpop.f32.mrb[0].mxu0
    %v1008 = vpop.f32.mrb[0].mxu0
    %1009 = vdwg.mxu0
    %1010 = vmatprep.subr.bf16.mxu0 %v189
    %1011 = vmatpush1.bf16.msra.mxu0 %v188
    %1012 = vmatprep.subr.bf16.mxu0 %v193
    %1013 = vmatpush1.bf16.msra.mxu0 %v192
    %1014 = vmatprep.subr.bf16.mxu0 %v197
    %1015 = vmatpush1.bf16.msra.mxu0 %v196
    %1016 = vmatprep.subr.bf16.mxu0 %v201
    %1017 = vmatpush1.bf16.msra.mxu0 %v200
    %1018 = vmatprep.subr.bf16.mxu0 %v205
    %1019 = vmatpush1.bf16.msra.mxu0 %v204
    %1020 = vmatprep.subr.bf16.mxu0 %v209
    %1021 = vmatpush1.bf16.msra.mxu0 %v208
    %1022 = vmatprep.subr.bf16.mxu0 %v213
    %1023 = vmatpush1.bf16.msra.mxu0 %v212
    %1024 = vmatprep.subr.bf16.mxu0 %v217
    %1025 = vmatpush1.bf16.msra.mxu0 %v216
    %1026 = vmatprep.subr.bf16.mxu0 0
    %1027 = vmatpush1.bf16.msra.mxu0 0
    %1028 = vmatprep.subr.bf16.mxu0 0
    %1029 = vmatpush1.bf16.msra.mxu0 0
    %1030 = vmatprep.subr.bf16.mxu0 0
    %1031 = vmatpush1.bf16.msra.mxu0 0
    %1032 = vmatprep.subr.bf16.mxu0 0
    %1033 = vmatpush1.bf16.msra.mxu0 0
    %1034 = vmatprep.subr.bf16.mxu0 0
    %1035 = vmatpush1.bf16.msra.mxu0 0
    %1036 = vmatprep.subr.bf16.mxu0 0
    %1037 = vmatpush1.bf16.msra.mxu0 0
    %1038 = vmatprep.subr.bf16.mxu0 0
    %1039 = vmatpush1.bf16.msra.mxu0 0
    %1040 = vmatprep.subr.bf16.mxu0 0
    %1041 = vmatpush1.bf16.msra.mxu0 0
    %1042 = vmatprep.mubr.bf16.mxu0 0
    %1043 = vmatmul.mubr.bf16.gmra.mrb[0].mxu0 %v959
    %v1044 = vpop.f32.mrb[0].mxu0
    %v1045 = vadd.f32 0.0, %v1044
    %v1046 = vpop.f32.mrb[0].mxu0
    %v1047 = vadd.f32 0.0, %v1046
    %v1048 = vpop.f32.mrb[0].mxu0
    %v1049 = vpop.f32.mrb[0].mxu0
    %1050 = vdwg.mxu0
    %v1051 = vadd.f32 %v965, %v1004
    %v1052 = vadd.f32 %v966, %v1006
    %v1053 = vadd.f32 %v967, %v1045
    %v1054 = vadd.f32 %v968, %v1047
    %v1055 = vxor.u32 %v1051, 2147483648
    %v1056 = vmul.f32 %v1055, 1.442695
    %v1057 = vpow.pop %v1056
    %v1058 = vadd.f32 %v1057, 1.0
    %v1059 = vrcp.pop %v1058
    %v1060 = vmul.f32 1.0, %v1059
    %v1061 = vxor.u32 %v1052, 2147483648
    %v1062 = vmul.f32 %v1061, 1.442695
    %v1063 = vpow.pop %v1062
    %v1064 = vadd.f32 %v1063, 1.0
    %v1065 = vrcp.pop %v1064
    %v1066 = vmul.f32 1.0, %v1065
    %v1067 = vtanh.pop %v1053
    %v1068 = vxor.u32 %v1054, 2147483648
    %v1069 = vmul.f32 %v1068, 1.442695
    %v1070 = vpow.pop %v1069
    %v1071 = vadd.f32 %v1070, 1.0
    %v1072 = vrcp.pop %v1071
    %v1073 = vmul.f32 1.0, %v1072
    %v1074 = vmul.f32 %v1066, %v956
    %v1075 = vmul.f32 %v1060, %v1067
    %v1076 = vadd.f32 %v1074, %v1075
    %v1077 = vtanh.pop %v1076
    %v1078 = vmul.f32 %v1073, %v1077
    %v1079 = vpack.c.bf16 %v1078, %v1078
    %s1080 = scalar_lea.vmem [#allocation9], 24
    %1081 = vst [vmem:[%s1080] sm:$0xf] %v1079
    %s1082 = scalar_lea.vmem [#allocation4], 112
    %v1083 = vld [vmem:[%s1082] sm:$0xff]
    %v1084 = vld [vmem:[%s1082 + $0x8] sm:$0xff]
    %v1085 = vunpack.c.l.bf16 %v1083
    %v1086 = vunpack.c.h.bf16 %v1083
    %v1087 = vunpack.c.l.bf16 %v1084
    %v1088 = vunpack.c.h.bf16 %v1084
    %1089 = vmatprep.subr.bf16.mxu0 %v187
    %1090 = vmatpush1.bf16.msra.mxu0 %v186
    %1091 = vmatprep.subr.bf16.mxu0 %v191
    %1092 = vmatpush1.bf16.msra.mxu0 %v190
    %1093 = vmatprep.subr.bf16.mxu0 %v195
    %1094 = vmatpush1.bf16.msra.mxu0 %v194
    %1095 = vmatprep.subr.bf16.mxu0 %v199
    %1096 = vmatpush1.bf16.msra.mxu0 %v198
    %1097 = vmatprep.subr.bf16.mxu0 %v203
    %1098 = vmatpush1.bf16.msra.mxu0 %v202
    %1099 = vmatprep.subr.bf16.mxu0 %v207
    %1100 = vmatpush1.bf16.msra.mxu0 %v206
    %1101 = vmatprep.subr.bf16.mxu0 %v211
    %1102 = vmatpush1.bf16.msra.mxu0 %v210
    %1103 = vmatprep.subr.bf16.mxu0 %v215
    %1104 = vmatpush1.bf16.msra.mxu0 %v214
    %1105 = vmatprep.subr.bf16.mxu0 0
    %1106 = vmatpush1.bf16.msra.mxu0 0
    %1107 = vmatprep.subr.bf16.mxu0 0
    %1108 = vmatpush1.bf16.msra.mxu0 0
    %1109 = vmatprep.subr.bf16.mxu0 0
    %1110 = vmatpush1.bf16.msra.mxu0 0
    %1111 = vmatprep.subr.bf16.mxu0 0
    %1112 = vmatpush1.bf16.msra.mxu0 0
    %1113 = vmatprep.subr.bf16.mxu0 0
    %1114 = vmatpush1.bf16.msra.mxu0 0
    %1115 = vmatprep.subr.bf16.mxu0 0
    %1116 = vmatpush1.bf16.msra.mxu0 0
    %1117 = vmatprep.subr.bf16.mxu0 0
    %1118 = vmatpush1.bf16.msra.mxu0 0
    %1119 = vmatprep.subr.bf16.mxu0 0
    %1120 = vmatpush1.bf16.msra.mxu0 0
    %1121 = vmatprep.mubr.bf16.mxu0 0
    %1122 = vmatmul.mubr.bf16.gmra.mrb[0].mxu0 %v1079
    %v1123 = vpop.f32.mrb[0].mxu0
    %v1124 = vadd.f32 0.0, %v1123
    %v1125 = vpop.f32.mrb[0].mxu0
    %v1126 = vadd.f32 0.0, %v1125
    %v1127 = vpop.f32.mrb[0].mxu0
    %v1128 = vpop.f32.mrb[0].mxu0
    %1129 = vdwg.mxu0
    %1130 = vmatprep.subr.bf16.mxu0 %v189
    %1131 = vmatpush1.bf16.msra.mxu0 %v188
    %1132 = vmatprep.subr.bf16.mxu0 %v193
    %1133 = vmatpush1.bf16.msra.mxu0 %v192
    %1134 = vmatprep.subr.bf16.mxu0 %v197
    %1135 = vmatpush1.bf16.msra.mxu0 %v196
    %1136 = vmatprep.subr.bf16.mxu0 %v201
    %1137 = vmatpush1.bf16.msra.mxu0 %v200
    %1138 = vmatprep.subr.bf16.mxu0 %v205
    %1139 = vmatpush1.bf16.msra.mxu0 %v204
    %1140 = vmatprep.subr.bf16.mxu0 %v209
    %1141 = vmatpush1.bf16.msra.mxu0 %v208
    %1142 = vmatprep.subr.bf16.mxu0 %v213
    %1143 = vmatpush1.bf16.msra.mxu0 %v212
    %1144 = vmatprep.subr.bf16.mxu0 %v217
    %1145 = vmatpush1.bf16.msra.mxu0 %v216
    %1146 = vmatprep.subr.bf16.mxu0 0
    %1147 = vmatpush1.bf16.msra.mxu0 0
    %1148 = vmatprep.subr.bf16.mxu0 0
    %1149 = vmatpush1.bf16.msra.mxu0 0
    %1150 = vmatprep.subr.bf16.mxu0 0
    %1151 = vmatpush1.bf16.msra.mxu0 0
    %1152 = vmatprep.subr.bf16.mxu0 0
    %1153 = vmatpush1.bf16.msra.mxu0 0
    %1154 = vmatprep.subr.bf16.mxu0 0
    %1155 = vmatpush1.bf16.msra.mxu0 0
    %1156 = vmatprep.subr.bf16.mxu0 0
    %1157 = vmatpush1.bf16.msra.mxu0 0
    %1158 = vmatprep.subr.bf16.mxu0 0
    %1159 = vmatpush1.bf16.msra.mxu0 0
    %1160 = vmatprep.subr.bf16.mxu0 0
    %1161 = vmatpush1.bf16.msra.mxu0 0
    %1162 = vmatprep.mubr.bf16.mxu0 0
    %1163 = vmatmul.mubr.bf16.gmra.mrb[0].mxu0 %v1079
    %v1164 = vpop.f32.mrb[0].mxu0
    %v1165 = vadd.f32 0.0, %v1164
    %v1166 = vpop.f32.mrb[0].mxu0
    %v1167 = vadd.f32 0.0, %v1166
    %v1168 = vpop.f32.mrb[0].mxu0
    %v1169 = vpop.f32.mrb[0].mxu0
    %1170 = vdwg.mxu0
    %v1171 = vadd.f32 %v1085, %v1124
    %v1172 = vadd.f32 %v1086, %v1126
    %v1173 = vadd.f32 %v1087, %v1165
    %v1174 = vadd.f32 %v1088, %v1167
    %v1175 = vxor.u32 %v1171, 2147483648
    %v1176 = vmul.f32 %v1175, 1.442695
    %v1177 = vpow.pop %v1176
    %v1178 = vadd.f32 %v1177, 1.0
    %v1179 = vrcp.pop %v1178
    %v1180 = vmul.f32 1.0, %v1179
    %v1181 = vxor.u32 %v1172, 2147483648
    %v1182 = vmul.f32 %v1181, 1.442695
    %v1183 = vpow.pop %v1182
    %v1184 = vadd.f32 %v1183, 1.0
    %v1185 = vrcp.pop %v1184
    %v1186 = vmul.f32 1.0, %v1185
    %v1187 = vtanh.pop %v1173
    %v1188 = vxor.u32 %v1174, 2147483648
    %v1189 = vmul.f32 %v1188, 1.442695
    %v1190 = vpow.pop %v1189
    %v1191 = vadd.f32 %v1190, 1.0
    %v1192 = vrcp.pop %v1191
    %v1193 = vmul.f32 1.0, %v1192
    %v1194 = vmul.f32 %v1186, %v1076
    %v1195 = vmul.f32 %v1180, %v1187
    %v1196 = vadd.f32 %v1194, %v1195
    %v1197 = vtanh.pop %v1196
    %v1198 = vmul.f32 %v1193, %v1197
    %v1199 = vpack.c.bf16 %v1198, %v1198
    %s1200 = scalar_lea.vmem [#allocation9], 28
    %1201 = vst [vmem:[%s1200] sm:$0xf] %v1199
    %1202 = vst [vmem:[#allocation2] sm:$0xf] %v1199
    %1203 = vst [vmem:[#allocation3] sm:$0xff] %v1196
    // Predicated region
    $region22: #{tpu_custom_call.1} parent=1 // pred_check
      %p1204 = pneg %p44
    $region23: #{tpu_custom_call.1} parent=1 // pred_check_branch
      %1206 = sbr.rel (%p1204) target = $region25
    $region24: #{tpu_custom_call.1} parent=1 // pred_region
      %v1207 = vld [vmem:[#allocation3] sm:$0xff]
      %1208 = vst [vmem:[#allocation10] sm:$0xff] %v1207
    $region25: #{tpu_custom_call.1} parent=1 // pred_fallthru
      _
    // Predicated region
    $region26: #{tpu_custom_call.1} parent=1 // pred_check
      _
    $region27: #{tpu_custom_call.1} parent=1 // pred_check_branch
      %1210 = sbr.rel (0) target = $region29
    $region28: #{tpu_custom_call.1} parent=1 // pred_region
      %s1212 = ssub.s32 512, 512
      %1213 = vsyncadd [#allocation6], %s1212
      %s1214 = sshll.u32 [#allocation9], 4
      %s1215 = int_to_ptr.vmem [resolvable:$true] %s1214
      %1220 = dma.vmem_to_hbm [thread:$0]  %s1215, 512, %s2, [#allocation6], 64, 64, 4
    $region29: #{tpu_custom_call.1} parent=1 // pred_fallthru
      _
    // Predicated region
    $region30: #{tpu_custom_call.1} parent=1 // pred_check
      _
    $region31: #{tpu_custom_call.1} parent=1 // pred_check_branch
      %1222 = sbr.rel (0) target = $region33
    $region32: #{tpu_custom_call.1} parent=1 // pred_region
      %s1224 = ssub.s32 128, 128
      %1225 = vsyncadd [#allocation11], %s1224
      %s1227 = sshll.u32 [#allocation10], 4
      %s1228 = int_to_ptr.vmem [resolvable:$true] %s1227
      %1230 = dma.vmem_to_hbm [thread:$0]  %s1228, 128, %s3, [#allocation11]
    $region33: #{tpu_custom_call.1} parent=1 // pred_fallthru
      _
    // Predicated region
    $region34: #{tpu_custom_call.1} parent=1 // pred_check
      _
    $region35: #{tpu_custom_call.1} parent=1 // pred_check_branch
      %1232 = sbr.rel (0) target = $region37
    $region36: #{tpu_custom_call.1} parent=1 // pred_region
      %1233 = dma.done [#allocation6], 512
    $region37: #{tpu_custom_call.1} parent=1 // pred_fallthru
      _
    // Predicated region
    $region38: #{tpu_custom_call.1} parent=1 // pred_check
      _
    $region39: #{tpu_custom_call.1} parent=1 // pred_check_branch
      %1235 = sbr.rel (0) target = $region41
    $region40: #{tpu_custom_call.1} parent=1 // pred_region
      %1236 = dma.done [#allocation11], 128
    $region41: #{tpu_custom_call.1} parent=1 // pred_fallthru
      _
    %1237 = vsyncpa [#allocation5], 1
    %1238 = vsyncpa [#allocation8], 1
    %1239 = vsyncpa [#allocation6], 1
    %1240 = vsyncpa [#allocation11], 1

</llo_original>
